<compile_context>
chip_gen: v5e
topology: v5e:2x2
jax: 0.10.0
libtpu: 0.0.40
codegen_flags: <defaults>
</compile_context>

<pallas_src>
import jax
import jax.numpy as jnp
from jax.experimental import pallas as pl
from jax.experimental.pallas import tpu as pltpu


# ---------------------------------------------------------------------------
# Pallas kernels
# ---------------------------------------------------------------------------
def _conv1_pool_kernel(p_ref, w_ref, o_ref):
    """conv1 (im2col matmul) + bias + ReLU + 2x2 maxpool, channel-major output.

    p_ref: (1, 4, 75, 196)  im2col patches, one per pool-window offset.
    w_ref: (6, 76)          [conv1 weight (6,75) | bias (6,1)].
    o_ref: (1, 6, 196)      pooled feature map, channel-major (lane-dense).
    """
    w = w_ref[:, 0:75]             # (6, 75)
    b = w_ref[:, 75:76]            # (6, 1)

    def mm(off):
        return jnp.dot(w, p_ref[0, off], preferred_element_type=jnp.float32)

    m = jnp.maximum(jnp.maximum(mm(0), mm(1)), jnp.maximum(mm(2), mm(3)))
    o_ref[0] = jnp.maximum(m + b, 0.0)


def _conv2_head_kernel(p_ref, wc_ref, w1_ref, hd_ref, o_ref):
    """conv2 + bias + ReLU + pool, then fc1/fc2/fc3 + softmax, all fused.

    p_ref : (1, 4, 150, 25)  conv2 im2col patches (one per pool offset).
    wc_ref: (16, 151)        [conv2 weight (16,150) | bias (16,1)].
    w1_ref: (16, 25, 120)    fc1 weight, pre-permuted per input channel.
    hd_ref: (232, 120)       packed fc1 bias / fc2 / fc3 weights + biases.
    o_ref : (1, 1, 4)        softmax probabilities.
    """
    w2 = wc_ref[:, 0:150]          # (16, 150)
    b2 = wc_ref[:, 150:151]        # (16, 1)

    def mm(off):
        return jnp.dot(w2, p_ref[0, off], preferred_element_type=jnp.float32)

    m = jnp.maximum(jnp.maximum(mm(0), mm(1)), jnp.maximum(mm(2), mm(3)))
    pool2 = jnp.maximum(m + b2, 0.0)                    # (16, 25) channel-major

    # fc1: flatten(pool2) @ W1.T expressed as a per-channel split-weight sum, so no
    # in-kernel (16,25)->(1,400) reshape is needed.  Flatten order (c, h, w) matches
    # PyTorch because w1_ref was permuted accordingly in pack_params().
    h = hd_ref[0:1, :]                                  # fc1 bias (1, 120)
    for c in range(16):
        h = h + jnp.dot(pool2[c:c + 1, :], w1_ref[c],
                        preferred_element_type=jnp.float32)
    h = jnp.maximum(h, 0.0)                             # (1, 120)

    fc2_w = hd_ref[8:128, 0:84]                         # (120, 84)
    fc2_b = hd_ref[128:129, 0:84]                       # (1, 84)
    h = jnp.maximum(jnp.dot(h, fc2_w, preferred_element_type=jnp.float32) + fc2_b, 0.0)

    fc3_w = hd_ref[136:220, 0:4]                        # (84, 4)
    fc3_b = hd_ref[224:225, 0:4]                        # (1, 4)
    logits = jnp.dot(h, fc3_w, preferred_element_type=jnp.float32) + fc3_b

    mx = jnp.max(logits, axis=-1, keepdims=True)
    e = jnp.exp(logits - mx)
    denom = jnp.sum(e, axis=-1, keepdims=True)
    o_ref[0] = e * pl.reciprocal(denom, approx=True)


# ---------------------------------------------------------------------------
# Wrapper-side layout glue (plain JAX / XLA)
# ---------------------------------------------------------------------------
def _pooled_patches_T(x, k, n_pool):
    """Transposed im2col for conv(kxk, VALID) fused with a following 2x2/2 maxpool.

    x: (B, C, H, W).  Returns (B, 4, C*k*k, n_pool*n_pool): for each of the 4
    pool-window offsets (dh, dw), a patch matrix whose rows are (c, kh, kw)
    features and whose columns are the pooled output positions (row-major).
    """
    bsz, c = x.shape[0], x.shape[1]
    span = 2 * n_pool - 1
    offs = []
    for dh in range(2):
        for dw in range(2):
            cols = []
            for kh in range(k):
                for kw in range(k):
                    sl = x[:, :, dh + kh:dh + kh + span:2, dw + kw:dw + kw + span:2]
                    cols.append(sl)                       # (B, C, n_pool, n_pool)
            p = jnp.stack(cols, axis=2)                   # (B, C, k*k, n, n)
            offs.append(p.reshape(bsz, c * k * k, n_pool * n_pool))
    return jnp.stack(offs, axis=1)                        # (B, 4, C*k*k, n*n)


def init_params(key):
    """PyTorch-default-style initialization for the module's parameters."""
    def linear(k, out_f, in_f):
        k1, k2 = jax.random.split(k)
        bound = 1.0 / (in_f ** 0.5)
        w = jax.random.uniform(k1, (out_f, in_f), jnp.float32, -bound, bound)
        b = jax.random.uniform(k2, (out_f,), jnp.float32, -bound, bound)
        return w, b

    def conv(k, out_c, in_c, ksz):
        k1, k2 = jax.random.split(k)
        bound = 1.0 / ((in_c * ksz * ksz) ** 0.5)
        w = jax.random.uniform(k1, (out_c, in_c, ksz, ksz), jnp.float32, -bound, bound)
        b = jax.random.uniform(k2, (out_c,), jnp.float32, -bound, bound)
        return w, b

    ks = jax.random.split(key, 5)
    p = {}
    p['conv1_w'], p['conv1_b'] = conv(ks[0], 6, 3, 5)
    p['conv2_w'], p['conv2_b'] = conv(ks[1], 16, 6, 5)
    p['fc1_w'], p['fc1_b'] = linear(ks[2], 120, 400)
    p['fc2_w'], p['fc2_b'] = linear(ks[3], 84, 120)
    p['fc3_w'], p['fc3_b'] = linear(ks[4], 4, 84)
    return p


def pack_params(p):
    """One-time weight repacking (pre-transposed, concatenated) done OUTSIDE forward()."""
    conv1 = jnp.concatenate(
        [p['conv1_w'].reshape(6, 75), p['conv1_b'].reshape(6, 1)], axis=1)      # (6, 76)
    conv2 = jnp.concatenate(
        [p['conv2_w'].reshape(16, 150), p['conv2_b'].reshape(16, 1)], axis=1)   # (16, 151)
    # fc1 weight permuted so the kernel can contract per input channel:
    #   fc1p[c, s, o] = fc1_w[o, c*25 + s]
    fc1p = p['fc1_w'].T.reshape(16, 25, 120)
    # Packed head array (rows aligned to multiples of 8 for clean static slices).
    head = jnp.zeros((232, 120), jnp.float32)
    head = head.at[0, :120].set(p['fc1_b'])
    head = head.at[8:128, :84].set(p['fc2_w'].T)
    head = head.at[128, :84].set(p['fc2_b'])
    head = head.at[136:220, :4].set(p['fc3_w'].T)
    head = head.at[224, :4].set(p['fc3_b'])
    return {'conv1': conv1, 'conv2': conv2, 'fc1_w': fc1p, 'head': head}


@jax.jit
def forward(packed, x):
    """x: (B, 3, 32, 32) float32  ->  (B, 4) softmax probabilities."""
    bsz = x.shape[0]
    parallel = pltpu.CompilerParams(dimension_semantics=("parallel",))

    # conv1 + ReLU + maxpool(2,2): 32x32 -> 14x14, channel-major (B, 6, 196)
    pats1 = _pooled_patches_T(x, 5, 14)                                        # (B,4,75,196)
    pool1 = pl.pallas_call(
        _conv1_pool_kernel,
        out_shape=jax.ShapeDtypeStruct((bsz, 6, 196), jnp.float32),
        grid=(bsz,),
        in_specs=[pl.BlockSpec((1, 4, 75, 196), lambda b: (b, 0, 0, 0)),
                  pl.BlockSpec((6, 76), lambda b: (0, 0))],
        out_specs=pl.BlockSpec((1, 6, 196), lambda b: (b, 0, 0)),
        compiler_params=parallel,
    )(pats1, packed['conv1'])

    # conv2 + ReLU + maxpool + full FC head + softmax, fused in one kernel.
    pats2 = _pooled_patches_T(pool1.reshape(bsz, 6, 14, 14), 5, 5)             # (B,4,150,25)
    out = pl.pallas_call(
        _conv2_head_kernel,
        out_shape=jax.ShapeDtypeStruct((bsz, 1, 4), jnp.float32),
        grid=(bsz,),
        in_specs=[pl.BlockSpec((1, 4, 150, 25), lambda b: (b, 0, 0, 0)),
                  pl.BlockSpec((16, 151), lambda b: (0, 0)),
                  pl.BlockSpec((16, 25, 120), lambda b: (0, 0, 0)),
                  pl.BlockSpec((232, 120), lambda b: (0, 0))],
        out_specs=pl.BlockSpec((1, 1, 4), lambda b: (b, 0, 0)),
        compiler_params=parallel,
    )(pats2, packed['conv2'], packed['fc1_w'], packed['head'])
    return out.reshape(bsz, 4)


def reference_forward(params, x):
    """Pure-JAX reference mirroring the PyTorch forward exactly."""
    p = params
    y = jax.lax.conv_general_dilated(x, p['conv1_w'], (1, 1), 'VALID',
                                     dimension_numbers=('NCHW', 'OIHW', 'NCHW'),
                                     precision=jax.lax.Precision.HIGHEST)
    y = jax.nn.relu(y + p['conv1_b'][None, :, None, None])
    y = jax.lax.reduce_window(y, -jnp.inf, jax.lax.max, (1, 1, 2, 2), (1, 1, 2, 2), 'VALID')
    y = jax.lax.conv_general_dilated(y, p['conv2_w'], (1, 1), 'VALID',
                                     dimension_numbers=('NCHW', 'OIHW', 'NCHW'),
                                     precision=jax.lax.Precision.HIGHEST)
    y = jax.nn.relu(y + p['conv2_b'][None, :, None, None])
    y = jax.lax.reduce_window(y, -jnp.inf, jax.lax.max, (1, 1, 2, 2), (1, 1, 2, 2), 'VALID')
    v = y.reshape(y.shape[0], -1)                                              # (B, 400)

    def lin(a, w, b):
        return jnp.dot(a, w.T, precision=jax.lax.Precision.HIGHEST) + b

    h = jax.nn.relu(lin(v, p['fc1_w'], p['fc1_b']))
    h = jax.nn.relu(lin(h, p['fc2_w'], p['fc2_b']))
    logits = lin(h, p['fc3_w'], p['fc3_b'])
    return jax.nn.softmax(logits, axis=-1)


if __name__ == "__main__":
    key = jax.random.PRNGKey(0)
    k_param, k_x = jax.random.split(key)
    params = init_params(k_param)
    packed = pack_params(params)

    # Architecture implies 32x32 RGB images; Linear(400, 120) fixes the spatial size.
    x = jax.random.normal(k_x, (2, 3, 32, 32), jnp.float32)

    out = forward(packed, x)
    out = jax.block_until_ready(out)

    ref = reference_forward(params, x)
    assert out.shape == (2, 4)
    assert bool(jnp.all(jnp.isfinite(out)))
    assert bool(jnp.allclose(jnp.sum(out, axis=-1), 1.0, atol=1e-2))
    assert bool(jnp.allclose(out, ref, atol=2e-2, rtol=2e-2)), (out, ref)
    print("KERNEL_OK")
</pallas_src>

<mosaic_0001>
module attributes {stable_mosaic.version = 11 : i64} {
  func.func @_conv1_pool_kernel(%arg0: i32, %arg1: memref<1x4x75x196xf32, #tpu.memory_space<vmem>>, %arg2: memref<6x76xf32, #tpu.memory_space<vmem>>, %arg3: memref<1x6x196xf32, #tpu.memory_space<vmem>>) attributes {dimension_semantics = [#tpu.dimension_semantics<parallel>], iteration_bounds = array<i64: 2>, scalar_prefetch = 0 : i64, scratch_operands = 0 : i64, tpu.core_type = #tpu.core_type<tc>, window_params = [{transform_indices = @transform_0, window_bounds = array<i64: 1, 4, 75, 196>}, {pipeline_mode = #tpu.pipeline_mode<synchronous>, transform_indices = @transform_1, window_bounds = array<i64: 6, 76>}, {transform_indices = @transform_2, window_bounds = array<i64: 1, 6, 196>}]} {
    %c0 = arith.constant 0 : index
    %c0_0 = arith.constant 0 : index
    %0 = vector.load %arg2[%c0, %c0_0] : memref<6x76xf32, #tpu.memory_space<vmem>>, vector<6x75xf32>
    %c0_1 = arith.constant 0 : index
    %c75 = arith.constant 75 : index
    %1 = vector.load %arg2[%c0_1, %c75] : memref<6x76xf32, #tpu.memory_space<vmem>>, vector<6x1xf32>
    %c0_2 = arith.constant 0 : index
    %c0_3 = arith.constant 0 : index
    %c0_4 = arith.constant 0 : index
    %c0_5 = arith.constant 0 : index
    %2 = vector.load %arg1[%c0_2, %c0_3, %c0_4, %c0_5] : memref<1x4x75x196xf32, #tpu.memory_space<vmem>>, vector<1x1x75x196xf32>
    %3 = vector.shape_cast %2 : vector<1x1x75x196xf32> to vector<75x196xf32>
    %cst = arith.constant dense<0.000000e+00> : vector<6x196xf32>
    %4 = tpu.matmul %0, %3, %cst {dimension_numbers = #tpu.dot_dimension_numbers<[1], [0], [0], [1], [0, 0, 1, 1], [], []>} : vector<6x75xf32>, vector<75x196xf32>, vector<6x196xf32> -> vector<6x196xf32>
    %c0_6 = arith.constant 0 : index
    %c1 = arith.constant 1 : index
    %c0_7 = arith.constant 0 : index
    %c0_8 = arith.constant 0 : index
    %5 = vector.load %arg1[%c0_6, %c1, %c0_7, %c0_8] : memref<1x4x75x196xf32, #tpu.memory_space<vmem>>, vector<1x1x75x196xf32>
    %6 = vector.shape_cast %5 : vector<1x1x75x196xf32> to vector<75x196xf32>
    %cst_9 = arith.constant dense<0.000000e+00> : vector<6x196xf32>
    %7 = tpu.matmul %0, %6, %cst_9 {dimension_numbers = #tpu.dot_dimension_numbers<[1], [0], [0], [1], [0, 0, 1, 1], [], []>} : vector<6x75xf32>, vector<75x196xf32>, vector<6x196xf32> -> vector<6x196xf32>
    %8 = arith.maximumf %4, %7 : vector<6x196xf32>
    %c0_10 = arith.constant 0 : index
    %c2 = arith.constant 2 : index
    %c0_11 = arith.constant 0 : index
    %c0_12 = arith.constant 0 : index
    %9 = vector.load %arg1[%c0_10, %c2, %c0_11, %c0_12] : memref<1x4x75x196xf32, #tpu.memory_space<vmem>>, vector<1x1x75x196xf32>
    %10 = vector.shape_cast %9 : vector<1x1x75x196xf32> to vector<75x196xf32>
    %cst_13 = arith.constant dense<0.000000e+00> : vector<6x196xf32>
    %11 = tpu.matmul %0, %10, %cst_13 {dimension_numbers = #tpu.dot_dimension_numbers<[1], [0], [0], [1], [0, 0, 1, 1], [], []>} : vector<6x75xf32>, vector<75x196xf32>, vector<6x196xf32> -> vector<6x196xf32>
    %c0_14 = arith.constant 0 : index
    %c3 = arith.constant 3 : index
    %c0_15 = arith.constant 0 : index
    %c0_16 = arith.constant 0 : index
    %12 = vector.load %arg1[%c0_14, %c3, %c0_15, %c0_16] : memref<1x4x75x196xf32, #tpu.memory_space<vmem>>, vector<1x1x75x196xf32>
    %13 = vector.shape_cast %12 : vector<1x1x75x196xf32> to vector<75x196xf32>
    %cst_17 = arith.constant dense<0.000000e+00> : vector<6x196xf32>
    %14 = tpu.matmul %0, %13, %cst_17 {dimension_numbers = #tpu.dot_dimension_numbers<[1], [0], [0], [1], [0, 0, 1, 1], [], []>} : vector<6x75xf32>, vector<75x196xf32>, vector<6x196xf32> -> vector<6x196xf32>
    %15 = arith.maximumf %11, %14 : vector<6x196xf32>
    %16 = arith.maximumf %8, %15 : vector<6x196xf32>
    %17 = vector.broadcast %1 : vector<6x1xf32> to vector<6x196xf32>
    %18 = arith.addf %16, %17 : vector<6x196xf32>
    %cst_18 = arith.constant 0.000000e+00 : f32
    %19 = vector.broadcast %cst_18 : f32 to vector<6x196xf32>
    %20 = arith.maximumf %18, %19 : vector<6x196xf32>
    %c0_19 = arith.constant 0 : index
    %c0_20 = arith.constant 0 : index
    %c0_21 = arith.constant 0 : index
    %21 = vector.load %arg3[%c0_19, %c0_20, %c0_21] : memref<1x6x196xf32, #tpu.memory_space<vmem>>, vector<1x6x196xf32>
    %22 = vector.shape_cast %21 : vector<1x6x196xf32> to vector<6x196xf32>
    %23 = vector.shape_cast %20 : vector<6x196xf32> to vector<1x6x196xf32>
    tpu.vector_store %arg3[%c0_19, %c0_20, %c0_21], %23 {strides = array<i32>} : memref<1x6x196xf32, #tpu.memory_space<vmem>>, vector<1x6x196xf32>,
    return
  }
  func.func @transform_0(%arg0: i32) -> (i32, i32, i32, i32) {
    %c0_i32 = arith.constant 0 : i32
    %c0_i32_0 = arith.constant 0 : i32
    %c0_i32_1 = arith.constant 0 : i32
    %c0_i32_2 = arith.constant 0 : i32
    return %arg0, %c0_i32, %c0_i32_0, %c0_i32_1 : i32, i32, i32, i32
  }
  func.func @transform_1(%arg0: i32) -> (i32, i32) {
    %c0_i32 = arith.constant 0 : i32
    %c0_i32_0 = arith.constant 0 : i32
    %c0_i32_1 = arith.constant 0 : i32
    return %c0_i32, %c0_i32_0 : i32, i32
  }
  func.func @transform_2(%arg0: i32) -> (i32, i32, i32) {
    %c0_i32 = arith.constant 0 : i32
    %c0_i32_0 = arith.constant 0 : i32
    %c0_i32_1 = arith.constant 0 : i32
    return %arg0, %c0_i32, %c0_i32_0 : i32, i32, i32
  }
}

module attributes {stable_mosaic.version = 11 : i64} {
  func.func @_conv2_head_kernel(%arg0: i32, %arg1: memref<1x4x150x25xf32, #tpu.memory_space<vmem>>, %arg2: memref<16x151xf32, #tpu.memory_space<vmem>>, %arg3: memref<16x25x120xf32, #tpu.memory_space<vmem>>, %arg4: memref<232x120xf32, #tpu.memory_space<vmem>>, %arg5: memref<1x1x4xf32, #tpu.memory_space<vmem>>) attributes {dimension_semantics = [#tpu.dimension_semantics<parallel>], iteration_bounds = array<i64: 2>, scalar_prefetch = 0 : i64, scratch_operands = 0 : i64, tpu.core_type = #tpu.core_type<tc>, window_params = [{transform_indices = @transform_0, window_bounds = array<i64: 1, 4, 150, 25>}, {pipeline_mode = #tpu.pipeline_mode<synchronous>, transform_indices = @transform_1, window_bounds = array<i64: 16, 151>}, {pipeline_mode = #tpu.pipeline_mode<synchronous>, transform_indices = @transform_2, window_bounds = array<i64: 16, 25, 120>}, {pipeline_mode = #tpu.pipeline_mode<synchronous>, transform_indices = @transform_3, window_bounds = array<i64: 232, 120>}, {transform_indices = @transform_4, window_bounds = array<i64: 1, 1, 4>}]} {
    %c0 = arith.constant 0 : index
    %c0_0 = arith.constant 0 : index
    %0 = vector.load %arg2[%c0, %c0_0] : memref<16x151xf32, #tpu.memory_space<vmem>>, vector<16x150xf32>
    %c0_1 = arith.constant 0 : index
    %c150 = arith.constant 150 : index
    %1 = vector.load %arg2[%c0_1, %c150] : memref<16x151xf32, #tpu.memory_space<vmem>>, vector<16x1xf32>
    %c0_2 = arith.constant 0 : index
    %c0_3 = arith.constant 0 : index
    %c0_4 = arith.constant 0 : index
    %c0_5 = arith.constant 0 : index
    %2 = vector.load %arg1[%c0_2, %c0_3, %c0_4, %c0_5] : memref<1x4x150x25xf32, #tpu.memory_space<vmem>>, vector<1x1x150x25xf32>
    %3 = vector.shape_cast %2 : vector<1x1x150x25xf32> to vector<150x25xf32>
    %cst = arith.constant dense<0.000000e+00> : vector<16x25xf32>
    %4 = tpu.matmul %0, %3, %cst {dimension_numbers = #tpu.dot_dimension_numbers<[1], [0], [0], [1], [0, 0, 1, 1], [], []>} : vector<16x150xf32>, vector<150x25xf32>, vector<16x25xf32> -> vector<16x25xf32>
    %c0_6 = arith.constant 0 : index
    %c1 = arith.constant 1 : index
    %c0_7 = arith.constant 0 : index
    %c0_8 = arith.constant 0 : index
    %5 = vector.load %arg1[%c0_6, %c1, %c0_7, %c0_8] : memref<1x4x150x25xf32, #tpu.memory_space<vmem>>, vector<1x1x150x25xf32>
    %6 = vector.shape_cast %5 : vector<1x1x150x25xf32> to vector<150x25xf32>
    %cst_9 = arith.constant dense<0.000000e+00> : vector<16x25xf32>
    %7 = tpu.matmul %0, %6, %cst_9 {dimension_numbers = #tpu.dot_dimension_numbers<[1], [0], [0], [1], [0, 0, 1, 1], [], []>} : vector<16x150xf32>, vector<150x25xf32>, vector<16x25xf32> -> vector<16x25xf32>
    %8 = arith.maximumf %4, %7 : vector<16x25xf32>
    %c0_10 = arith.constant 0 : index
    %c2 = arith.constant 2 : index
    %c0_11 = arith.constant 0 : index
    %c0_12 = arith.constant 0 : index
    %9 = vector.load %arg1[%c0_10, %c2, %c0_11, %c0_12] : memref<1x4x150x25xf32, #tpu.memory_space<vmem>>, vector<1x1x150x25xf32>
    %10 = vector.shape_cast %9 : vector<1x1x150x25xf32> to vector<150x25xf32>
    %cst_13 = arith.constant dense<0.000000e+00> : vector<16x25xf32>
    %11 = tpu.matmul %0, %10, %cst_13 {dimension_numbers = #tpu.dot_dimension_numbers<[1], [0], [0], [1], [0, 0, 1, 1], [], []>} : vector<16x150xf32>, vector<150x25xf32>, vector<16x25xf32> -> vector<16x25xf32>
    %c0_14 = arith.constant 0 : index
    %c3 = arith.constant 3 : index
    %c0_15 = arith.constant 0 : index
    %c0_16 = arith.constant 0 : index
    %12 = vector.load %arg1[%c0_14, %c3, %c0_15, %c0_16] : memref<1x4x150x25xf32, #tpu.memory_space<vmem>>, vector<1x1x150x25xf32>
    %13 = vector.shape_cast %12 : vector<1x1x150x25xf32> to vector<150x25xf32>
    %cst_17 = arith.constant dense<0.000000e+00> : vector<16x25xf32>
    %14 = tpu.matmul %0, %13, %cst_17 {dimension_numbers = #tpu.dot_dimension_numbers<[1], [0], [0], [1], [0, 0, 1, 1], [], []>} : vector<16x150xf32>, vector<150x25xf32>, vector<16x25xf32> -> vector<16x25xf32>
    %15 = arith.maximumf %11, %14 : vector<16x25xf32>
    %16 = arith.maximumf %8, %15 : vector<16x25xf32>
    %17 = vector.broadcast %1 : vector<16x1xf32> to vector<16x25xf32>
    %18 = arith.addf %16, %17 : vector<16x25xf32>
    %cst_18 = arith.constant 0.000000e+00 : f32
    %19 = vector.broadcast %cst_18 : f32 to vector<16x25xf32>
    %20 = arith.maximumf %18, %19 : vector<16x25xf32>
    %c0_19 = arith.constant 0 : index
    %c0_20 = arith.constant 0 : index
    %21 = vector.load %arg4[%c0_19, %c0_20] : memref<232x120xf32, #tpu.memory_space<vmem>>, vector<1x120xf32>
    %22 = vector.extract_strided_slice %20 {offsets = [0, 0], sizes = [1, 25], strides = [1, 1]} : vector<16x25xf32> to vector<1x25xf32>
    %c0_21 = arith.constant 0 : index
    %c0_22 = arith.constant 0 : index
    %c0_23 = arith.constant 0 : index
    %23 = vector.load %arg3[%c0_21, %c0_22, %c0_23] : memref<16x25x120xf32, #tpu.memory_space<vmem>>, vector<1x25x120xf32>
    %24 = vector.shape_cast %23 : vector<1x25x120xf32> to vector<25x120xf32>
    %cst_24 = arith.constant dense<0.000000e+00> : vector<1x120xf32>
    %25 = tpu.matmul %22, %24, %cst_24 {dimension_numbers = #tpu.dot_dimension_numbers<[1], [0], [0], [1], [0, 0, 1, 1], [], []>} : vector<1x25xf32>, vector<25x120xf32>, vector<1x120xf32> -> vector<1x120xf32>
    %26 = arith.addf %21, %25 : vector<1x120xf32>
    %27 = vector.extract_strided_slice %20 {offsets = [1, 0], sizes = [1, 25], strides = [1, 1]} : vector<16x25xf32> to vector<1x25xf32>
    %c1_25 = arith.constant 1 : index
    %c0_26 = arith.constant 0 : index
    %c0_27 = arith.constant 0 : index
    %28 = vector.load %arg3[%c1_25, %c0_26, %c0_27] : memref<16x25x120xf32, #tpu.memory_space<vmem>>, vector<1x25x120xf32>
    %29 = vector.shape_cast %28 : vector<1x25x120xf32> to vector<25x120xf32>
    %cst_28 = arith.constant dense<0.000000e+00> : vector<1x120xf32>
    %30 = tpu.matmul %27, %29, %cst_28 {dimension_numbers = #tpu.dot_dimension_numbers<[1], [0], [0], [1], [0, 0, 1, 1], [], []>} : vector<1x25xf32>, vector<25x120xf32>, vector<1x120xf32> -> vector<1x120xf32>
    %31 = arith.addf %26, %30 : vector<1x120xf32>
    %32 = vector.extract_strided_slice %20 {offsets = [2, 0], sizes = [1, 25], strides = [1, 1]} : vector<16x25xf32> to vector<1x25xf32>
    %c2_29 = arith.constant 2 : index
    %c0_30 = arith.constant 0 : index
    %c0_31 = arith.constant 0 : index
    %33 = vector.load %arg3[%c2_29, %c0_30, %c0_31] : memref<16x25x120xf32, #tpu.memory_space<vmem>>, vector<1x25x120xf32>
    %34 = vector.shape_cast %33 : vector<1x25x120xf32> to vector<25x120xf32>
    %cst_32 = arith.constant dense<0.000000e+00> : vector<1x120xf32>
    %35 = tpu.matmul %32, %34, %cst_32 {dimension_numbers = #tpu.dot_dimension_numbers<[1], [0], [0], [1], [0, 0, 1, 1], [], []>} : vector<1x25xf32>, vector<25x120xf32>, vector<1x120xf32> -> vector<1x120xf32>
    %36 = arith.addf %31, %35 : vector<1x120xf32>
    %37 = vector.extract_strided_slice %20 {offsets = [3, 0], sizes = [1, 25], strides = [1, 1]} : vector<16x25xf32> to vector<1x25xf32>
    %c3_33 = arith.constant 3 : index
    %c0_34 = arith.constant 0 : index
    %c0_35 = arith.constant 0 : index
    %38 = vector.load %arg3[%c3_33, %c0_34, %c0_35] : memref<16x25x120xf32, #tpu.memory_space<vmem>>, vector<1x25x120xf32>
    %39 = vector.shape_cast %38 : vector<1x25x120xf32> to vector<25x120xf32>
    %cst_36 = arith.constant dense<0.000000e+00> : vector<1x120xf32>
    %40 = tpu.matmul %37, %39, %cst_36 {dimension_numbers = #tpu.dot_dimension_numbers<[1], [0], [0], [1], [0, 0, 1, 1], [], []>} : vector<1x25xf32>, vector<25x120xf32>, vector<1x120xf32> -> vector<1x120xf32>
    %41 = arith.addf %36, %40 : vector<1x120xf32>
    %42 = vector.extract_strided_slice %20 {offsets = [4, 0], sizes = [1, 25], strides = [1, 1]} : vector<16x25xf32> to vector<1x25xf32>
    %c4 = arith.constant 4 : index
    %c0_37 = arith.constant 0 : index
    %c0_38 = arith.constant 0 : index
    %43 = vector.load %arg3[%c4, %c0_37, %c0_38] : memref<16x25x120xf32, #tpu.memory_space<vmem>>, vector<1x25x120xf32>
    %44 = vector.shape_cast %43 : vector<1x25x120xf32> to vector<25x120xf32>
    %cst_39 = arith.constant dense<0.000000e+00> : vector<1x120xf32>
    %45 = tpu.matmul %42, %44, %cst_39 {dimension_numbers = #tpu.dot_dimension_numbers<[1], [0], [0], [1], [0, 0, 1, 1], [], []>} : vector<1x25xf32>, vector<25x120xf32>, vector<1x120xf32> -> vector<1x120xf32>
    %46 = arith.addf %41, %45 : vector<1x120xf32>
    %47 = vector.extract_strided_slice %20 {offsets = [5, 0], sizes = [1, 25], strides = [1, 1]} : vector<16x25xf32> to vector<1x25xf32>
    %c5 = arith.constant 5 : index
    %c0_40 = arith.constant 0 : index
    %c0_41 = arith.constant 0 : index
    %48 = vector.load %arg3[%c5, %c0_40, %c0_41] : memref<16x25x120xf32, #tpu.memory_space<vmem>>, vector<1x25x120xf32>
    %49 = vector.shape_cast %48 : vector<1x25x120xf32> to vector<25x120xf32>
    %cst_42 = arith.constant dense<0.000000e+00> : vector<1x120xf32>
    %50 = tpu.matmul %47, %49, %cst_42 {dimension_numbers = #tpu.dot_dimension_numbers<[1], [0], [0], [1], [0, 0, 1, 1], [], []>} : vector<1x25xf32>, vector<25x120xf32>, vector<1x120xf32> -> vector<1x120xf32>
    %51 = arith.addf %46, %50 : vector<1x120xf32>
    %52 = vector.extract_strided_slice %20 {offsets = [6, 0], sizes = [1, 25], strides = [1, 1]} : vector<16x25xf32> to vector<1x25xf32>
    %c6 = arith.constant 6 : index
    %c0_43 = arith.constant 0 : index
    %c0_44 = arith.constant 0 : index
    %53 = vector.load %arg3[%c6, %c0_43, %c0_44] : memref<16x25x120xf32, #tpu.memory_space<vmem>>, vector<1x25x120xf32>
    %54 = vector.shape_cast %53 : vector<1x25x120xf32> to vector<25x120xf32>
    %cst_45 = arith.constant dense<0.000000e+00> : vector<1x120xf32>
    %55 = tpu.matmul %52, %54, %cst_45 {dimension_numbers = #tpu.dot_dimension_numbers<[1], [0], [0], [1], [0, 0, 1, 1], [], []>} : vector<1x25xf32>, vector<25x120xf32>, vector<1x120xf32> -> vector<1x120xf32>
    %56 = arith.addf %51, %55 : vector<1x120xf32>
    %57 = vector.extract_strided_slice %20 {offsets = [7, 0], sizes = [1, 25], strides = [1, 1]} : vector<16x25xf32> to vector<1x25xf32>
    %c7 = arith.constant 7 : index
    %c0_46 = arith.constant 0 : index
    %c0_47 = arith.constant 0 : index
    %58 = vector.load %arg3[%c7, %c0_46, %c0_47] : memref<16x25x120xf32, #tpu.memory_space<vmem>>, vector<1x25x120xf32>
    %59 = vector.shape_cast %58 : vector<1x25x120xf32> to vector<25x120xf32>
    %cst_48 = arith.constant dense<0.000000e+00> : vector<1x120xf32>
    %60 = tpu.matmul %57, %59, %cst_48 {dimension_numbers = #tpu.dot_dimension_numbers<[1], [0], [0], [1], [0, 0, 1, 1], [], []>} : vector<1x25xf32>, vector<25x120xf32>, vector<1x120xf32> -> vector<1x120xf32>
    %61 = arith.addf %56, %60 : vector<1x120xf32>
    %62 = vector.extract_strided_slice %20 {offsets = [8, 0], sizes = [1, 25], strides = [1, 1]} : vector<16x25xf32> to vector<1x25xf32>
    %c8 = arith.constant 8 : index
    %c0_49 = arith.constant 0 : index
    %c0_50 = arith.constant 0 : index
    %63 = vector.load %arg3[%c8, %c0_49, %c0_50] : memref<16x25x120xf32, #tpu.memory_space<vmem>>, vector<1x25x120xf32>
    %64 = vector.shape_cast %63 : vector<1x25x120xf32> to vector<25x120xf32>
    %cst_51 = arith.constant dense<0.000000e+00> : vector<1x120xf32>
    %65 = tpu.matmul %62, %64, %cst_51 {dimension_numbers = #tpu.dot_dimension_numbers<[1], [0], [0], [1], [0, 0, 1, 1], [], []>} : vector<1x25xf32>, vector<25x120xf32>, vector<1x120xf32> -> vector<1x120xf32>
    %66 = arith.addf %61, %65 : vector<1x120xf32>
    %67 = vector.extract_strided_slice %20 {offsets = [9, 0], sizes = [1, 25], strides = [1, 1]} : vector<16x25xf32> to vector<1x25xf32>
    %c9 = arith.constant 9 : index
    %c0_52 = arith.constant 0 : index
    %c0_53 = arith.constant 0 : index
    %68 = vector.load %arg3[%c9, %c0_52, %c0_53] : memref<16x25x120xf32, #tpu.memory_space<vmem>>, vector<1x25x120xf32>
    %69 = vector.shape_cast %68 : vector<1x25x120xf32> to vector<25x120xf32>
    %cst_54 = arith.constant dense<0.000000e+00> : vector<1x120xf32>
    %70 = tpu.matmul %67, %69, %cst_54 {dimension_numbers = #tpu.dot_dimension_numbers<[1], [0], [0], [1], [0, 0, 1, 1], [], []>} : vector<1x25xf32>, vector<25x120xf32>, vector<1x120xf32> -> vector<1x120xf32>
    %71 = arith.addf %66, %70 : vector<1x120xf32>
    %72 = vector.extract_strided_slice %20 {offsets = [10, 0], sizes = [1, 25], strides = [1, 1]} : vector<16x25xf32> to vector<1x25xf32>
    %c10 = arith.constant 10 : index
    %c0_55 = arith.constant 0 : index
    %c0_56 = arith.constant 0 : index
    %73 = vector.load %arg3[%c10, %c0_55, %c0_56] : memref<16x25x120xf32, #tpu.memory_space<vmem>>, vector<1x25x120xf32>
    %74 = vector.shape_cast %73 : vector<1x25x120xf32> to vector<25x120xf32>
    %cst_57 = arith.constant dense<0.000000e+00> : vector<1x120xf32>
    %75 = tpu.matmul %72, %74, %cst_57 {dimension_numbers = #tpu.dot_dimension_numbers<[1], [0], [0], [1], [0, 0, 1, 1], [], []>} : vector<1x25xf32>, vector<25x120xf32>, vector<1x120xf32> -> vector<1x120xf32>
    %76 = arith.addf %71, %75 : vector<1x120xf32>
    %77 = vector.extract_strided_slice %20 {offsets = [11, 0], sizes = [1, 25], strides = [1, 1]} : vector<16x25xf32> to vector<1x25xf32>
    %c11 = arith.constant 11 : index
    %c0_58 = arith.constant 0 : index
    %c0_59 = arith.constant 0 : index
    %78 = vector.load %arg3[%c11, %c0_58, %c0_59] : memref<16x25x120xf32, #tpu.memory_space<vmem>>, vector<1x25x120xf32>
    %79 = vector.shape_cast %78 : vector<1x25x120xf32> to vector<25x120xf32>
    %cst_60 = arith.constant dense<0.000000e+00> : vector<1x120xf32>
    %80 = tpu.matmul %77, %79, %cst_60 {dimension_numbers = #tpu.dot_dimension_numbers<[1], [0], [0], [1], [0, 0, 1, 1], [], []>} : vector<1x25xf32>, vector<25x120xf32>, vector<1x120xf32> -> vector<1x120xf32>
    %81 = arith.addf %76, %80 : vector<1x120xf32>
    %82 = vector.extract_strided_slice %20 {offsets = [12, 0], sizes = [1, 25], strides = [1, 1]} : vector<16x25xf32> to vector<1x25xf32>
    %c12 = arith.constant 12 : index
    %c0_61 = arith.constant 0 : index
    %c0_62 = arith.constant 0 : index
    %83 = vector.load %arg3[%c12, %c0_61, %c0_62] : memref<16x25x120xf32, #tpu.memory_space<vmem>>, vector<1x25x120xf32>
    %84 = vector.shape_cast %83 : vector<1x25x120xf32> to vector<25x120xf32>
    %cst_63 = arith.constant dense<0.000000e+00> : vector<1x120xf32>
    %85 = tpu.matmul %82, %84, %cst_63 {dimension_numbers = #tpu.dot_dimension_numbers<[1], [0], [0], [1], [0, 0, 1, 1], [], []>} : vector<1x25xf32>, vector<25x120xf32>, vector<1x120xf32> -> vector<1x120xf32>
    %86 = arith.addf %81, %85 : vector<1x120xf32>
    %87 = vector.extract_strided_slice %20 {offsets = [13, 0], sizes = [1, 25], strides = [1, 1]} : vector<16x25xf32> to vector<1x25xf32>
    %c13 = arith.constant 13 : index
    %c0_64 = arith.constant 0 : index
    %c0_65 = arith.constant 0 : index
    %88 = vector.load %arg3[%c13, %c0_64, %c0_65] : memref<16x25x120xf32, #tpu.memory_space<vmem>>, vector<1x25x120xf32>
    %89 = vector.shape_cast %88 : vector<1x25x120xf32> to vector<25x120xf32>
    %cst_66 = arith.constant dense<0.000000e+00> : vector<1x120xf32>
    %90 = tpu.matmul %87, %89, %cst_66 {dimension_numbers = #tpu.dot_dimension_numbers<[1], [0], [0], [1], [0, 0, 1, 1], [], []>} : vector<1x25xf32>, vector<25x120xf32>, vector<1x120xf32> -> vector<1x120xf32>
    %91 = arith.addf %86, %90 : vector<1x120xf32>
    %92 = vector.extract_strided_slice %20 {offsets = [14, 0], sizes = [1, 25], strides = [1, 1]} : vector<16x25xf32> to vector<1x25xf32>
    %c14 = arith.constant 14 : index
    %c0_67 = arith.constant 0 : index
    %c0_68 = arith.constant 0 : index
    %93 = vector.load %arg3[%c14, %c0_67, %c0_68] : memref<16x25x120xf32, #tpu.memory_space<vmem>>, vector<1x25x120xf32>
    %94 = vector.shape_cast %93 : vector<1x25x120xf32> to vector<25x120xf32>
    %cst_69 = arith.constant dense<0.000000e+00> : vector<1x120xf32>
    %95 = tpu.matmul %92, %94, %cst_69 {dimension_numbers = #tpu.dot_dimension_numbers<[1], [0], [0], [1], [0, 0, 1, 1], [], []>} : vector<1x25xf32>, vector<25x120xf32>, vector<1x120xf32> -> vector<1x120xf32>
    %96 = arith.addf %91, %95 : vector<1x120xf32>
    %97 = vector.extract_strided_slice %20 {offsets = [15, 0], sizes = [1, 25], strides = [1, 1]} : vector<16x25xf32> to vector<1x25xf32>
    %c15 = arith.constant 15 : index
    %c0_70 = arith.constant 0 : index
    %c0_71 = arith.constant 0 : index
    %98 = vector.load %arg3[%c15, %c0_70, %c0_71] : memref<16x25x120xf32, #tpu.memory_space<vmem>>, vector<1x25x120xf32>
    %99 = vector.shape_cast %98 : vector<1x25x120xf32> to vector<25x120xf32>
    %cst_72 = arith.constant dense<0.000000e+00> : vector<1x120xf32>
    %100 = tpu.matmul %97, %99, %cst_72 {dimension_numbers = #tpu.dot_dimension_numbers<[1], [0], [0], [1], [0, 0, 1, 1], [], []>} : vector<1x25xf32>, vector<25x120xf32>, vector<1x120xf32> -> vector<1x120xf32>
    %101 = arith.addf %96, %100 : vector<1x120xf32>
    %cst_73 = arith.constant 0.000000e+00 : f32
    %102 = vector.broadcast %cst_73 : f32 to vector<1x120xf32>
    %103 = arith.maximumf %101, %102 : vector<1x120xf32>
    %c8_74 = arith.constant 8 : index
    %c0_75 = arith.constant 0 : index
    %104 = vector.load %arg4[%c8_74, %c0_75] : memref<232x120xf32, #tpu.memory_space<vmem>>, vector<120x84xf32>
    %c128 = arith.constant 128 : index
    %c0_76 = arith.constant 0 : index
    %105 = vector.load %arg4[%c128, %c0_76] : memref<232x120xf32, #tpu.memory_space<vmem>>, vector<1x84xf32>
    %cst_77 = arith.constant dense<0.000000e+00> : vector<1x84xf32>
    %106 = tpu.matmul %103, %104, %cst_77 {dimension_numbers = #tpu.dot_dimension_numbers<[1], [0], [0], [1], [0, 0, 1, 1], [], []>} : vector<1x120xf32>, vector<120x84xf32>, vector<1x84xf32> -> vector<1x84xf32>
    %107 = arith.addf %106, %105 : vector<1x84xf32>
    %cst_78 = arith.constant 0.000000e+00 : f32
    %108 = vector.broadcast %cst_78 : f32 to vector<1x84xf32>
    %109 = arith.maximumf %107, %108 : vector<1x84xf32>
    %c136 = arith.constant 136 : index
    %c0_79 = arith.constant 0 : index
    %110 = vector.load %arg4[%c136, %c0_79] : memref<232x120xf32, #tpu.memory_space<vmem>>, vector<84x4xf32>
    %c224 = arith.constant 224 : index
    %c0_80 = arith.constant 0 : index
    %111 = vector.load %arg4[%c224, %c0_80] : memref<232x120xf32, #tpu.memory_space<vmem>>, vector<1x4xf32>
    %cst_81 = arith.constant dense<0.000000e+00> : vector<1x4xf32>
    %112 = tpu.matmul %109, %110, %cst_81 {dimension_numbers = #tpu.dot_dimension_numbers<[1], [0], [0], [1], [0, 0, 1, 1], [], []>} : vector<1x84xf32>, vector<84x4xf32>, vector<1x4xf32> -> vector<1x4xf32>
    %113 = arith.addf %112, %111 : vector<1x4xf32>
    %cst_82 = arith.constant dense<0xFF800000> : vector<1xf32>
    %114 = vector.multi_reduction <maximumf>, %113, %cst_82 [1] : vector<1x4xf32> to vector<1xf32>
    %115 = vector.shape_cast %114 : vector<1xf32> to vector<1x1xf32>
    %116 = vector.broadcast %115 : vector<1x1xf32> to vector<1x4xf32>
    %117 = arith.subf %113, %116 : vector<1x4xf32>
    %118 = math.exp %117 : vector<1x4xf32>
    %cst_83 = arith.constant dense<0.000000e+00> : vector<1xf32>
    %119 = vector.multi_reduction <add>, %118, %cst_83 [1] : vector<1x4xf32> to vector<1xf32>
    %120 = vector.shape_cast %119 : vector<1xf32> to vector<1x1xf32>
    %121 = tpu.reciprocal %120 {approx = true} : vector<1x1xf32> -> vector<1x1xf32>
    %122 = vector.broadcast %121 : vector<1x1xf32> to vector<1x4xf32>
    %123 = arith.mulf %118, %122 : vector<1x4xf32>
    %c0_84 = arith.constant 0 : index
    %c0_85 = arith.constant 0 : index
    %c0_86 = arith.constant 0 : index
    %124 = vector.load %arg5[%c0_84, %c0_85, %c0_86] : memref<1x1x4xf32, #tpu.memory_space<vmem>>, vector<1x1x4xf32>
    %125 = vector.shape_cast %124 : vector<1x1x4xf32> to vector<1x4xf32>
    %126 = vector.shape_cast %123 : vector<1x4xf32> to vector<1x1x4xf32>
    tpu.vector_store %arg5[%c0_84, %c0_85, %c0_86], %126 {strides = array<i32>} : memref<1x1x4xf32, #tpu.memory_space<vmem>>, vector<1x1x4xf32>,
    return
  }
  func.func @transform_0(%arg0: i32) -> (i32, i32, i32, i32) {
    %c0_i32 = arith.constant 0 : i32
    %c0_i32_0 = arith.constant 0 : i32
    %c0_i32_1 = arith.constant 0 : i32
    %c0_i32_2 = arith.constant 0 : i32
    return %arg0, %c0_i32, %c0_i32_0, %c0_i32_1 : i32, i32, i32, i32
  }
  func.func @transform_1(%arg0: i32) -> (i32, i32) {
    %c0_i32 = arith.constant 0 : i32
    %c0_i32_0 = arith.constant 0 : i32
    %c0_i32_1 = arith.constant 0 : i32
    return %c0_i32, %c0_i32_0 : i32, i32
  }
  func.func @transform_2(%arg0: i32) -> (i32, i32, i32) {
    %c0_i32 = arith.constant 0 : i32
    %c0_i32_0 = arith.constant 0 : i32
    %c0_i32_1 = arith.constant 0 : i32
    %c0_i32_2 = arith.constant 0 : i32
    return %c0_i32, %c0_i32_0, %c0_i32_1 : i32, i32, i32
  }
  func.func @transform_3(%arg0: i32) -> (i32, i32) {
    %c0_i32 = arith.constant 0 : i32
    %c0_i32_0 = arith.constant 0 : i32
    %c0_i32_1 = arith.constant 0 : i32
    return %c0_i32, %c0_i32_0 : i32, i32
  }
  func.func @transform_4(%arg0: i32) -> (i32, i32, i32) {
    %c0_i32 = arith.constant 0 : i32
    %c0_i32_0 = arith.constant 0 : i32
    %c0_i32_1 = arith.constant 0 : i32
    return %arg0, %c0_i32, %c0_i32_0 : i32, i32, i32
  }
}

</mosaic_0001>

<llo_original>
// kernel: forward.2
$region0: #{forward.2}
  #allocation0 [shape = 'u32[]', space=smem, size = 0x4, offset = 0x4, fixed_abs, tag = 'smem constant byte address 0x4 - core index']
  #allocation1 [shape = 'u32[72,128]{1,0:T(1,128)}', space=vmem, size = 0x9000, scoped, tag = 'internal scratch']
  %s0 = inlined_call_operand.vmem [shape: f32[2,4,75,196], index: 0, kind: input, shape index: {}]
  %s1 = inlined_call_operand.vmem [shape: f32[6,76], index: 1, kind: input, shape index: {}]
  %s2 = inlined_call_operand.vmem [shape: f32[2,6,196], index: 2, kind: output, shape index: {}]
  %s3 = sld [smem:[#allocation0]]
  $region41: #{forward.2} parent=0
    _
  %s5 = ssub.s32 1, %s3
  %s6 = scalar_select 0, %s5, %s3
  loop: start=0, step=1, limit=4
  $region2: #{forward.2} parent=0 // loop_pre_header
    _
  $region3: #{forward.2} parent=0 // loop_header
    %s8 = sphi 0, %s12
    %p9 = scmp.ge.s32.totalorder %s8, 4
    %s18 = sphi 0, %s20
    %s21 = sphi 0, %s18
    %s22 = sphi 0, %s21
    %s38 = sphi 0, %s22
    %s42 = sphi 0, %s42
    %s44 = sphi 0, %s42
    %s45 = sphi 0, %s44
    %s59 = sphi 0, %s45
    %s65 = sphi 0, %s67
    %s68 = sphi 0, %s65
    %s69 = sphi 0, %s68
    %s85 = sphi 0, %s69
  $region4: #{forward.2} parent=0 // loop_header_branch
    %11 = sbr.rel (%p9) target = $region8
  $region5: #{forward.2} parent=0 // loop_body
    %s13 = ssub.s32 %s8, 1
    %s14 = ssub.s32 %s8, 2
    %s15 = sadd.s32 %s8, 1
    %s16 = ssub.s32 %s8, %s15
    %p17 = scmp.eq.s32.totalorder %s16, 0
    %s19 = sadd.s32 %s18, 1
    %s20 = scalar_select %p17, %s18, %s19
    %p23 = pneg %p17
    %p24 = scmp.eq.s32.totalorder %s8, 1
    %p25 = por %p23, %p24
    %p26 = scmp.ne.s32.totalorder %s18, %s21
    %p27 = scmp.eq.s32.totalorder %s8, 0
    %p28 = por %p26, %p27
    %p29 = scmp.ne.s32.totalorder %s18, %s21
    %p30 = scmp.eq.s32.totalorder %s13, 1
    %p31 = por %p29, %p30
    %p32 = scmp.ne.s32.totalorder %s21, %s22
    %p33 = scmp.eq.s32.totalorder %s13, 0
    %p34 = por %p32, %p33
    %p35 = scmp.ne.s32.totalorder %s21, %s22
    %p36 = scmp.eq.s32.totalorder %s14, 1
    %p37 = por %p35, %p36
    %p39 = scmp.ne.s32.totalorder %s22, %s38
    %p40 = scmp.eq.s32.totalorder %s14, 0
    %p41 = por %p39, %p40
    %s43 = sadd.s32 %s42, 1
    %p46 = scmp.eq.s32.totalorder %s8, 1
    %p47 = scmp.ne.s32.totalorder %s42, %s44
    %p48 = scmp.eq.s32.totalorder %s8, 0
    %p49 = por %p47, %p48
    %p50 = scmp.ne.s32.totalorder %s42, %s44
    %p51 = scmp.eq.s32.totalorder %s13, 1
    %p52 = por %p50, %p51
    %p53 = scmp.ne.s32.totalorder %s44, %s45
    %p54 = scmp.eq.s32.totalorder %s13, 0
    %p55 = por %p53, %p54
    %p56 = scmp.ne.s32.totalorder %s44, %s45
    %p57 = scmp.eq.s32.totalorder %s14, 1
    %p58 = por %p56, %p57
    %p60 = scmp.ne.s32.totalorder %s45, %s59
    %p61 = scmp.eq.s32.totalorder %s14, 0
    %p62 = por %p60, %p61
    %s63 = ssub.s32 %s8, %s15
    %p64 = scmp.eq.s32.totalorder %s63, 0
    %s66 = sadd.s32 %s65, 1
    %s67 = scalar_select %p64, %s65, %s66
    %p70 = pneg %p64
    %p71 = scmp.eq.s32.totalorder %s8, 1
    %p72 = por %p70, %p71
    %p73 = scmp.ne.s32.totalorder %s65, %s68
    %p74 = scmp.eq.s32.totalorder %s8, 0
    %p75 = por %p73, %p74
    %p76 = scmp.ne.s32.totalorder %s65, %s68
    %p77 = scmp.eq.s32.totalorder %s13, 1
    %p78 = por %p76, %p77
    %p79 = scmp.ne.s32.totalorder %s68, %s69
    %p80 = scmp.eq.s32.totalorder %s13, 0
    %p81 = por %p79, %p80
    %p82 = scmp.ne.s32.totalorder %s68, %s69
    %p83 = scmp.eq.s32.totalorder %s14, 1
    %p84 = por %p82, %p83
    %p86 = scmp.ne.s32.totalorder %s69, %s85
    %p87 = scmp.eq.s32.totalorder %s14, 0
    %p88 = por %p86, %p87
    %p89 = scmp.le.s32.totalorder 1, %s8
    %p90 = scmp.lt.s32.totalorder %s8, 3
    %p91 = pnand %p89, %p90
    %p92 = pneg %p91
    // Predicated region
    $region9: #{forward.2} parent=5 // pred_check
      _
    $region10: #{forward.2} parent=5 // pred_check_branch
      %94 = sbr.rel (%p91) target = $region12
    $region11: #{forward.2} parent=5 // pred_region
      %s95 = ssub.s32 %s8, 1
      // Predicated region
      $region13: #{forward.2} parent=11 // pred_check
        %p96 = pneg %p55
      $region14: #{forward.2} parent=11 // pred_check_branch
        %98 = sbr.rel (%p96) target = $region16
      $region15: #{forward.2} parent=11 // pred_region
        _
      $region16: #{forward.2} parent=11 // pred_fallthru
        _
    $region12: #{forward.2} parent=5 // pred_fallthru
      _
    %p99 = scmp.lt.s32.totalorder %s8, 2
    // Predicated region
    $region17: #{forward.2} parent=5 // pred_check
      %p100 = pneg %p99
    $region18: #{forward.2} parent=5 // pred_check_branch
      %102 = sbr.rel (%p100) target = $region20
    $region19: #{forward.2} parent=5 // pred_region
      // Predicated region
      $region21: #{forward.2} parent=19 // pred_check
        %p103 = pneg %p28
      $region22: #{forward.2} parent=19 // pred_check_branch
        %105 = sbr.rel (%p103) target = $region24
      $region23: #{forward.2} parent=19 // pred_region
        %p106 = scmp.lt.s32.totalorder %s8, 1
        %s107 = scalar_select %p106, %s8, 1
        %s108 = smul.addr %s107, 80
        %s109 = smul.addr %s108, 8
        %s110 = scalar_lea.vmem %s0, %s109
      $region24: #{forward.2} parent=19 // pred_fallthru
        _
    $region20: #{forward.2} parent=5 // pred_fallthru
      _
    %p111 = scmp.le.s32.totalorder 1, %s8
    %p112 = scmp.lt.s32.totalorder %s8, 3
    %p113 = pnand %p111, %p112
    %p114 = pneg %p113
    // Predicated region
    $region25: #{forward.2} parent=5 // pred_check
      _
    $region26: #{forward.2} parent=5 // pred_check_branch
      %116 = sbr.rel (%p113) target = $region28
    $region27: #{forward.2} parent=5 // pred_region
      %s117 = ssub.s32 %s8, 1
      %p118 = scmp.lt.s32.totalorder %s13, 1
      %s119 = scalar_select %p118, %s13, 1
      %s120 = smul.addr %s119, 80
      %s121 = smul.addr %s120, 8
      %s122 = scalar_lea.vmem %s0, %s121
      %p123 = pneg %p34
      %p124 = pneg %p31
      %p125 = pneg %p55
      %p126 = pneg %p52
      %p127 = pneg %p81
      %p128 = pneg %p78
      %p129 = scmp.lt.s32.totalorder %s13, 1
      %s130 = scalar_select %p129, %s13, 1
      %s131 = smul.addr %s130, 2
      %s132 = smul.addr %s131, 8
      %s133 = scalar_lea.vmem %s2, %s132
      %p134 = scmp.lt.s32.totalorder %s13, 1
      %s135 = scalar_select %p134, %s13, 1
      %s136 = smul.addr %s135, 80
      %s137 = smul.addr %s136, 8
      %s138 = scalar_lea.vmem %s0, %s137
      %p139 = scmp.lt.s32.totalorder %s13, 1
      %s140 = scalar_select %p139, %s13, 1
      %s141 = smul.addr %s140, 2
      %s142 = smul.addr %s141, 8
      %s143 = scalar_lea.vmem %s2, %s142
      %v144 = vld [vmem:[%s1] sm:$0x3f]
      %v145 = vld [vmem:[%s138] sm:$0xff]
      %v146 = vld [vmem:[%s138 + $0x8] sm:$0xff]
      %v147 = vld [vmem:[%s138 + $0x10] sm:$0xff]
      %v148 = vld [vmem:[%s138 + $0x18] sm:$0xff]
      %v149 = vld [vmem:[%s138 + $0x20] sm:$0xff]
      %v150 = vld [vmem:[%s138 + $0x28] sm:$0xff]
      %v151 = vld [vmem:[%s138 + $0x30] sm:$0xff]
      %v152 = vld [vmem:[%s138 + $0x38] sm:$0xff]
      %v153 = vld [vmem:[%s138 + $0x40] sm:$0xff]
      %v154 = vld [vmem:[%s138 + $0x48] sm:$0xff]
      %v155 = vld [vmem:[%s138 + $0x50] sm:$0xff]
      %v156 = vld [vmem:[%s138 + $0x58] sm:$0xff]
      %v157 = vld [vmem:[%s138 + $0x60] sm:$0xff]
      %v158 = vld [vmem:[%s138 + $0x68] sm:$0xff]
      %v159 = vld [vmem:[%s138 + $0x70] sm:$0xff]
      %v160 = vld [vmem:[%s138 + $0x78] sm:$0xff]
      %v161 = vld [vmem:[%s138 + $0x80] sm:$0xff]
      %v162 = vld [vmem:[%s138 + $0x88] sm:$0xff]
      %v163 = vld [vmem:[%s138 + $0x90] sm:$0x7]
      %v164 = vld [vmem:[%s138 + $0x98] sm:$0x7]
      %vm165 = vcmask 613376
      %v167 = vsel %vm165, %v144, 0
      %vm169 = vcmask 1042432
      %v171 = vsel %vm169, %v163, 0
      %v174 = vsel %vm169, %v164, 0
      %176 = vmatpush.msra.mxu0 0.0
      %177 = vmatpush.msra.mxu0 0.0
      %178 = vmatpush.msra.mxu0 0.0
      %179 = vmatpush.msra.mxu0 0.0
      %180 = vmatpush.msra.mxu0 0.0
      %181 = vmatpush.msra.mxu0 0.0
      %182 = vmatpush.msra.mxu0 %v171
      %183 = vmatpush.msra.mxu0 %v161
      %184 = vmatpush.msra.mxu0 %v159
      %185 = vmatpush.msra.mxu0 %v157
      %186 = vmatpush.msra.mxu0 %v155
      %187 = vmatpush.msra.mxu0 %v153
      %188 = vmatpush.msra.mxu0 %v151
      %189 = vmatpush.msra.mxu0 %v149
      %190 = vmatpush.msra.mxu0 %v147
      %191 = vmatpush.msra.mxu0 %v145
      %192 = vmatmul.f32.gmra.mxu0 %v167
      %v193 = vpop.f32.mrf.mxu0
      %v194 = vadd.f32 0.0, %v193
      %195 = vdwg.mxu0
      %196 = vmatpush.msra.mxu0 0.0
      %197 = vmatpush.msra.mxu0 0.0
      %198 = vmatpush.msra.mxu0 0.0
      %199 = vmatpush.msra.mxu0 0.0
      %200 = vmatpush.msra.mxu0 0.0
      %201 = vmatpush.msra.mxu0 0.0
      %202 = vmatpush.msra.mxu0 %v174
      %203 = vmatpush.msra.mxu0 %v162
      %204 = vmatpush.msra.mxu0 %v160
      %205 = vmatpush.msra.mxu0 %v158
      %206 = vmatpush.msra.mxu0 %v156
      %207 = vmatpush.msra.mxu0 %v154
      %208 = vmatpush.msra.mxu0 %v152
      %209 = vmatpush.msra.mxu0 %v150
      %210 = vmatpush.msra.mxu0 %v148
      %211 = vmatpush.msra.mxu0 %v146
      %212 = vmatmul.f32.gmra.mxu0 %v167
      %v213 = vpop.f32.mrf.mxu0
      %v214 = vadd.f32 0.0, %v213
      %215 = vdwg.mxu0
      %s216 = scalar_lea.vmem %s138, 160
      %v217 = vld [vmem:[%s216] sm:$0xff]
      %v218 = vld [vmem:[%s216 + $0x8] sm:$0xff]
      %v219 = vld [vmem:[%s216 + $0x10] sm:$0xff]
      %v220 = vld [vmem:[%s216 + $0x18] sm:$0xff]
      %v221 = vld [vmem:[%s216 + $0x20] sm:$0xff]
      %v222 = vld [vmem:[%s216 + $0x28] sm:$0xff]
      %v223 = vld [vmem:[%s216 + $0x30] sm:$0xff]
      %v224 = vld [vmem:[%s216 + $0x38] sm:$0xff]
      %v225 = vld [vmem:[%s216 + $0x40] sm:$0xff]
      %v226 = vld [vmem:[%s216 + $0x48] sm:$0xff]
      %v227 = vld [vmem:[%s216 + $0x50] sm:$0xff]
      %v228 = vld [vmem:[%s216 + $0x58] sm:$0xff]
      %v229 = vld [vmem:[%s216 + $0x60] sm:$0xff]
      %v230 = vld [vmem:[%s216 + $0x68] sm:$0xff]
      %v231 = vld [vmem:[%s216 + $0x70] sm:$0xff]
      %v232 = vld [vmem:[%s216 + $0x78] sm:$0xff]
      %v233 = vld [vmem:[%s216 + $0x80] sm:$0xff]
      %v234 = vld [vmem:[%s216 + $0x88] sm:$0xff]
      %v235 = vld [vmem:[%s216 + $0x90] sm:$0x7]
      %v236 = vld [vmem:[%s216 + $0x98] sm:$0x7]
      %v238 = vsel %vm169, %v235, 0
      %v241 = vsel %vm169, %v236, 0
      %243 = vmatpush.msra.mxu0 0.0
      %244 = vmatpush.msra.mxu0 0.0
      %245 = vmatpush.msra.mxu0 0.0
      %246 = vmatpush.msra.mxu0 0.0
      %247 = vmatpush.msra.mxu0 0.0
      %248 = vmatpush.msra.mxu0 0.0
      %249 = vmatpush.msra.mxu0 %v238
      %250 = vmatpush.msra.mxu0 %v233
      %251 = vmatpush.msra.mxu0 %v231
      %252 = vmatpush.msra.mxu0 %v229
      %253 = vmatpush.msra.mxu0 %v227
      %254 = vmatpush.msra.mxu0 %v225
      %255 = vmatpush.msra.mxu0 %v223
      %256 = vmatpush.msra.mxu0 %v221
      %257 = vmatpush.msra.mxu0 %v219
      %258 = vmatpush.msra.mxu0 %v217
      %259 = vmatmul.f32.gmra.mxu0 %v167
      %v260 = vpop.f32.mrf.mxu0
      %v261 = vadd.f32 0.0, %v260
      %262 = vdwg.mxu0
      %263 = vmatpush.msra.mxu0 0.0
      %264 = vmatpush.msra.mxu0 0.0
      %265 = vmatpush.msra.mxu0 0.0
      %266 = vmatpush.msra.mxu0 0.0
      %267 = vmatpush.msra.mxu0 0.0
      %268 = vmatpush.msra.mxu0 0.0
      %269 = vmatpush.msra.mxu0 %v241
      %270 = vmatpush.msra.mxu0 %v234
      %271 = vmatpush.msra.mxu0 %v232
      %272 = vmatpush.msra.mxu0 %v230
      %273 = vmatpush.msra.mxu0 %v228
      %274 = vmatpush.msra.mxu0 %v226
      %275 = vmatpush.msra.mxu0 %v224
      %276 = vmatpush.msra.mxu0 %v222
      %277 = vmatpush.msra.mxu0 %v220
      %278 = vmatpush.msra.mxu0 %v218
      %279 = vmatmul.f32.gmra.mxu0 %v167
      %v280 = vpop.f32.mrf.mxu0
      %v281 = vadd.f32 0.0, %v280
      %282 = vdwg.mxu0
      %v283 = vmax.f32 %v194, %v261
      %v284 = vmax.f32 %v214, %v281
      %s285 = scalar_lea.vmem %s138, 320
      %v286 = vld [vmem:[%s285] sm:$0xff]
      %v287 = vld [vmem:[%s285 + $0x8] sm:$0xff]
      %v288 = vld [vmem:[%s285 + $0x10] sm:$0xff]
      %v289 = vld [vmem:[%s285 + $0x18] sm:$0xff]
      %v290 = vld [vmem:[%s285 + $0x20] sm:$0xff]
      %v291 = vld [vmem:[%s285 + $0x28] sm:$0xff]
      %v292 = vld [vmem:[%s285 + $0x30] sm:$0xff]
      %v293 = vld [vmem:[%s285 + $0x38] sm:$0xff]
      %v294 = vld [vmem:[%s285 + $0x40] sm:$0xff]
      %v295 = vld [vmem:[%s285 + $0x48] sm:$0xff]
      %v296 = vld [vmem:[%s285 + $0x50] sm:$0xff]
      %v297 = vld [vmem:[%s285 + $0x58] sm:$0xff]
      %v298 = vld [vmem:[%s285 + $0x60] sm:$0xff]
      %v299 = vld [vmem:[%s285 + $0x68] sm:$0xff]
      %v300 = vld [vmem:[%s285 + $0x70] sm:$0xff]
      %v301 = vld [vmem:[%s285 + $0x78] sm:$0xff]
      %v302 = vld [vmem:[%s285 + $0x80] sm:$0xff]
      %v303 = vld [vmem:[%s285 + $0x88] sm:$0xff]
      %v304 = vld [vmem:[%s285 + $0x90] sm:$0x7]
      %v305 = vld [vmem:[%s285 + $0x98] sm:$0x7]
      %v307 = vsel %vm169, %v304, 0
      %v310 = vsel %vm169, %v305, 0
      %312 = vmatpush.msra.mxu0 0.0
      %313 = vmatpush.msra.mxu0 0.0
      %314 = vmatpush.msra.mxu0 0.0
      %315 = vmatpush.msra.mxu0 0.0
      %316 = vmatpush.msra.mxu0 0.0
      %317 = vmatpush.msra.mxu0 0.0
      %318 = vmatpush.msra.mxu0 %v307
      %319 = vmatpush.msra.mxu0 %v302
      %320 = vmatpush.msra.mxu0 %v300
      %321 = vmatpush.msra.mxu0 %v298
      %322 = vmatpush.msra.mxu0 %v296
      %323 = vmatpush.msra.mxu0 %v294
      %324 = vmatpush.msra.mxu0 %v292
      %325 = vmatpush.msra.mxu0 %v290
      %326 = vmatpush.msra.mxu0 %v288
      %327 = vmatpush.msra.mxu0 %v286
      %328 = vmatmul.f32.gmra.mxu0 %v167
      %v329 = vpop.f32.mrf.mxu0
      %v330 = vadd.f32 0.0, %v329
      %331 = vdwg.mxu0
      %332 = vmatpush.msra.mxu0 0.0
      %333 = vmatpush.msra.mxu0 0.0
      %334 = vmatpush.msra.mxu0 0.0
      %335 = vmatpush.msra.mxu0 0.0
      %336 = vmatpush.msra.mxu0 0.0
      %337 = vmatpush.msra.mxu0 0.0
      %338 = vmatpush.msra.mxu0 %v310
      %339 = vmatpush.msra.mxu0 %v303
      %340 = vmatpush.msra.mxu0 %v301
      %341 = vmatpush.msra.mxu0 %v299
      %342 = vmatpush.msra.mxu0 %v297
      %343 = vmatpush.msra.mxu0 %v295
      %344 = vmatpush.msra.mxu0 %v293
      %345 = vmatpush.msra.mxu0 %v291
      %346 = vmatpush.msra.mxu0 %v289
      %347 = vmatpush.msra.mxu0 %v287
      %348 = vmatmul.f32.gmra.mxu0 %v167
      %v349 = vpop.f32.mrf.mxu0
      %v350 = vadd.f32 0.0, %v349
      %351 = vdwg.mxu0
      %s352 = scalar_lea.vmem %s138, 480
      %v353 = vld [vmem:[%s352] sm:$0xff]
      %v354 = vld [vmem:[%s352 + $0x8] sm:$0xff]
      %v355 = vld [vmem:[%s352 + $0x10] sm:$0xff]
      %v356 = vld [vmem:[%s352 + $0x18] sm:$0xff]
      %v357 = vld [vmem:[%s352 + $0x20] sm:$0xff]
      %v358 = vld [vmem:[%s352 + $0x28] sm:$0xff]
      %v359 = vld [vmem:[%s352 + $0x30] sm:$0xff]
      %v360 = vld [vmem:[%s352 + $0x38] sm:$0xff]
      %v361 = vld [vmem:[%s352 + $0x40] sm:$0xff]
      %v362 = vld [vmem:[%s352 + $0x48] sm:$0xff]
      %v363 = vld [vmem:[%s352 + $0x50] sm:$0xff]
      %v364 = vld [vmem:[%s352 + $0x58] sm:$0xff]
      %v365 = vld [vmem:[%s352 + $0x60] sm:$0xff]
      %v366 = vld [vmem:[%s352 + $0x68] sm:$0xff]
      %v367 = vld [vmem:[%s352 + $0x70] sm:$0xff]
      %v368 = vld [vmem:[%s352 + $0x78] sm:$0xff]
      %v369 = vld [vmem:[%s352 + $0x80] sm:$0xff]
      %v370 = vld [vmem:[%s352 + $0x88] sm:$0xff]
      %v371 = vld [vmem:[%s352 + $0x90] sm:$0x7]
      %v372 = vld [vmem:[%s352 + $0x98] sm:$0x7]
      %v374 = vsel %vm169, %v371, 0
      %v377 = vsel %vm169, %v372, 0
      %379 = vmatpush.msra.mxu0 0.0
      %380 = vmatpush.msra.mxu0 0.0
      %381 = vmatpush.msra.mxu0 0.0
      %382 = vmatpush.msra.mxu0 0.0
      %383 = vmatpush.msra.mxu0 0.0
      %384 = vmatpush.msra.mxu0 0.0
      %385 = vmatpush.msra.mxu0 %v374
      %386 = vmatpush.msra.mxu0 %v369
      %387 = vmatpush.msra.mxu0 %v367
      %388 = vmatpush.msra.mxu0 %v365
      %389 = vmatpush.msra.mxu0 %v363
      %390 = vmatpush.msra.mxu0 %v361
      %391 = vmatpush.msra.mxu0 %v359
      %392 = vmatpush.msra.mxu0 %v357
      %393 = vmatpush.msra.mxu0 %v355
      %394 = vmatpush.msra.mxu0 %v353
      %395 = vmatmul.f32.gmra.mxu0 %v167
      %v396 = vpop.f32.mrf.mxu0
      %v397 = vadd.f32 0.0, %v396
      %398 = vdwg.mxu0
      %399 = vmatpush.msra.mxu0 0.0
      %400 = vmatpush.msra.mxu0 0.0
      %401 = vmatpush.msra.mxu0 0.0
      %402 = vmatpush.msra.mxu0 0.0
      %403 = vmatpush.msra.mxu0 0.0
      %404 = vmatpush.msra.mxu0 0.0
      %405 = vmatpush.msra.mxu0 %v377
      %406 = vmatpush.msra.mxu0 %v370
      %407 = vmatpush.msra.mxu0 %v368
      %408 = vmatpush.msra.mxu0 %v366
      %409 = vmatpush.msra.mxu0 %v364
      %410 = vmatpush.msra.mxu0 %v362
      %411 = vmatpush.msra.mxu0 %v360
      %412 = vmatpush.msra.mxu0 %v358
      %413 = vmatpush.msra.mxu0 %v356
      %414 = vmatpush.msra.mxu0 %v354
      %415 = vmatmul.f32.gmra.mxu0 %v167
      %v416 = vpop.f32.mrf.mxu0
      %v417 = vadd.f32 0.0, %v416
      %418 = vdwg.mxu0
      %v419 = vmax.f32 %v330, %v397
      %v420 = vmax.f32 %v350, %v417
      %v421 = vmax.f32 %v283, %v419
      %v422 = vmax.f32 %v284, %v420
      %423 = vset.pattern.permute.xlu0 75
      %424 = vperm.xlu0 %423, %v144
      %v425 = vpop.permute.xlu0 %424
      %v427 = vadd.f32 %v421, %v425
      %v428 = vadd.f32 %v422, %v425
      %v429 = vmax.f32 %v427, 0.0
      %v430 = vmax.f32 %v428, 0.0
      %431 = vst [vmem:[%s143] sm:$0x3f] %v429
      %vm432 = vcmask 553984
      %433 = vst.msk [vmem:[%s143 + $0x8] sm:$0x3f] %vm432, %v430
      %p434 = scmp.lt.s32.totalorder %s13, 1
      %s435 = scalar_select %p434, %s13, 1
      %s436 = smul.addr %s435, 2
      %s437 = smul.addr %s436, 8
      %s438 = scalar_lea.vmem %s2, %s437
      // Predicated region
      $region29: #{forward.2} parent=27 // pred_check
        %p439 = pneg %p78
      $region30: #{forward.2} parent=27 // pred_check_branch
        %441 = sbr.rel (%p439) target = $region32
      $region31: #{forward.2} parent=27 // pred_region
        _
      $region32: #{forward.2} parent=27 // pred_fallthru
        _
    $region28: #{forward.2} parent=5 // pred_fallthru
      _
    %p442 = scmp.le.s32.totalorder 2, %s8
    // Predicated region
    $region33: #{forward.2} parent=5 // pred_check
      %p443 = pneg %p442
    $region34: #{forward.2} parent=5 // pred_check_branch
      %445 = sbr.rel (%p443) target = $region36
    $region35: #{forward.2} parent=5 // pred_region
      %s446 = ssub.s32 %s8, 2
      // Predicated region
      $region37: #{forward.2} parent=35 // pred_check
        %p447 = pneg %p84
      $region38: #{forward.2} parent=35 // pred_check_branch
        %449 = sbr.rel (%p447) target = $region40
      $region39: #{forward.2} parent=35 // pred_region
        %p450 = scmp.lt.s32.totalorder %s14, 1
        %s451 = scalar_select %p450, %s14, 1
        %s452 = smul.addr %s451, 2
        %s453 = smul.addr %s452, 8
        %s454 = scalar_lea.vmem %s2, %s453
      $region40: #{forward.2} parent=35 // pred_fallthru
        _
    $region36: #{forward.2} parent=5 // pred_fallthru
      _
  $region6: #{forward.2} parent=0 // loop_footer
    %s12 = sadd.s32 1, %s8
  $region7: #{forward.2} parent=0 // loop_footer_branch
    %7 = sbr.rel target = $region3
  $region8: #{forward.2} parent=0 // loop_exit
    _

// kernel: forward.3
$region0: #{forward.3}
  #allocation0 [shape = 'u32[]', space=smem, size = 0x4, offset = 0x4, fixed_abs, tag = 'smem constant byte address 0x4 - core index']
  #allocation1 [shape = 'u32[72,128]{1,0:T(1,128)}', space=vmem, size = 0x9000, scoped, tag = 'internal scratch']
  %s0 = inlined_call_operand.vmem [shape: f32[2,4,150,25], index: 0, kind: input, shape index: {}]
  %s1 = inlined_call_operand.vmem [shape: f32[16,151], index: 1, kind: input, shape index: {}]
  %s2 = inlined_call_operand.vmem [shape: f32[16,25,120], index: 2, kind: input, shape index: {}]
  %s3 = inlined_call_operand.vmem [shape: f32[232,120], index: 3, kind: input, shape index: {}]
  %s4 = inlined_call_operand.hbm [shape: f32[2,1,4], index: 4, kind: output, shape index: {}]
  %s5 = sld [smem:[#allocation0]]
  $region49: #{forward.3} parent=0
    _
  %s7 = ssub.s32 1, %s5
  %s8 = scalar_select 0, %s7, %s5
  $region1: #{forward.3} parent=0
    #allocation2 [shape = 'u8[1024]{0}', space=vmem, size = 0x400, scoped, tag = 'output window, operand 0']
    #allocation3 [shape = 's32[2]{0}', space=sflag, size = 0x8, scoped, tag = 'scoped memory for forward.3']
    %9 = vsyncpa [#allocation3], 0
    %s10 = scalar_lea.sflag [#allocation3], 1
    %11 = vsyncpa %s10, 0
    loop: start=0, step=1, limit=4
    $region2: #{forward.3} parent=1 // loop_pre_header
      _
    $region3: #{forward.3} parent=1 // loop_header
      %s13 = sphi 0, %s17
      %p14 = scmp.ge.s32.totalorder %s13, 4
      %s23 = sphi 0, %s25
      %s26 = sphi 0, %s23
      %s27 = sphi 0, %s26
      %s43 = sphi 0, %s27
      %s47 = sphi 0, %s47
      %s49 = sphi 0, %s47
      %s50 = sphi 0, %s49
      %s64 = sphi 0, %s50
      %s68 = sphi 0, %s68
      %s70 = sphi 0, %s68
      %s71 = sphi 0, %s70
      %s85 = sphi 0, %s71
      %s89 = sphi 0, %s89
      %s91 = sphi 0, %s89
      %s92 = sphi 0, %s91
      %s106 = sphi 0, %s92
      %s112 = sphi 0, %s114
      %s115 = sphi 0, %s112
      %s116 = sphi 0, %s115
      %s132 = sphi 0, %s116
    $region4: #{forward.3} parent=1 // loop_header_branch
      %16 = sbr.rel (%p14) target = $region8
    $region5: #{forward.3} parent=1 // loop_body
      %s18 = ssub.s32 %s13, 1
      %s19 = ssub.s32 %s13, 2
      %s20 = sadd.s32 %s13, 1
      %s21 = ssub.s32 %s13, %s20
      %p22 = scmp.eq.s32.totalorder %s21, 0
      %s24 = sadd.s32 %s23, 1
      %s25 = scalar_select %p22, %s23, %s24
      %p28 = pneg %p22
      %p29 = scmp.eq.s32.totalorder %s13, 1
      %p30 = por %p28, %p29
      %p31 = scmp.ne.s32.totalorder %s23, %s26
      %p32 = scmp.eq.s32.totalorder %s13, 0
      %p33 = por %p31, %p32
      %p34 = scmp.ne.s32.totalorder %s23, %s26
      %p35 = scmp.eq.s32.totalorder %s18, 1
      %p36 = por %p34, %p35
      %p37 = scmp.ne.s32.totalorder %s26, %s27
      %p38 = scmp.eq.s32.totalorder %s18, 0
      %p39 = por %p37, %p38
      %p40 = scmp.ne.s32.totalorder %s26, %s27
      %p41 = scmp.eq.s32.totalorder %s19, 1
      %p42 = por %p40, %p41
      %p44 = scmp.ne.s32.totalorder %s27, %s43
      %p45 = scmp.eq.s32.totalorder %s19, 0
      %p46 = por %p44, %p45
      %s48 = sadd.s32 %s47, 1
      %p51 = scmp.eq.s32.totalorder %s13, 1
      %p52 = scmp.ne.s32.totalorder %s47, %s49
      %p53 = scmp.eq.s32.totalorder %s13, 0
      %p54 = por %p52, %p53
      %p55 = scmp.ne.s32.totalorder %s47, %s49
      %p56 = scmp.eq.s32.totalorder %s18, 1
      %p57 = por %p55, %p56
      %p58 = scmp.ne.s32.totalorder %s49, %s50
      %p59 = scmp.eq.s32.totalorder %s18, 0
      %p60 = por %p58, %p59
      %p61 = scmp.ne.s32.totalorder %s49, %s50
      %p62 = scmp.eq.s32.totalorder %s19, 1
      %p63 = por %p61, %p62
      %p65 = scmp.ne.s32.totalorder %s50, %s64
      %p66 = scmp.eq.s32.totalorder %s19, 0
      %p67 = por %p65, %p66
      %s69 = sadd.s32 %s68, 1
      %p72 = scmp.eq.s32.totalorder %s13, 1
      %p73 = scmp.ne.s32.totalorder %s68, %s70
      %p74 = scmp.eq.s32.totalorder %s13, 0
      %p75 = por %p73, %p74
      %p76 = scmp.ne.s32.totalorder %s68, %s70
      %p77 = scmp.eq.s32.totalorder %s18, 1
      %p78 = por %p76, %p77
      %p79 = scmp.ne.s32.totalorder %s70, %s71
      %p80 = scmp.eq.s32.totalorder %s18, 0
      %p81 = por %p79, %p80
      %p82 = scmp.ne.s32.totalorder %s70, %s71
      %p83 = scmp.eq.s32.totalorder %s19, 1
      %p84 = por %p82, %p83
      %p86 = scmp.ne.s32.totalorder %s71, %s85
      %p87 = scmp.eq.s32.totalorder %s19, 0
      %p88 = por %p86, %p87
      %s90 = sadd.s32 %s89, 1
      %p93 = scmp.eq.s32.totalorder %s13, 1
      %p94 = scmp.ne.s32.totalorder %s89, %s91
      %p95 = scmp.eq.s32.totalorder %s13, 0
      %p96 = por %p94, %p95
      %p97 = scmp.ne.s32.totalorder %s89, %s91
      %p98 = scmp.eq.s32.totalorder %s18, 1
      %p99 = por %p97, %p98
      %p100 = scmp.ne.s32.totalorder %s91, %s92
      %p101 = scmp.eq.s32.totalorder %s18, 0
      %p102 = por %p100, %p101
      %p103 = scmp.ne.s32.totalorder %s91, %s92
      %p104 = scmp.eq.s32.totalorder %s19, 1
      %p105 = por %p103, %p104
      %p107 = scmp.ne.s32.totalorder %s92, %s106
      %p108 = scmp.eq.s32.totalorder %s19, 0
      %p109 = por %p107, %p108
      %s110 = ssub.s32 %s13, %s20
      %p111 = scmp.eq.s32.totalorder %s110, 0
      %s113 = sadd.s32 %s112, 1
      %s114 = scalar_select %p111, %s112, %s113
      %p117 = pneg %p111
      %p118 = scmp.eq.s32.totalorder %s13, 1
      %p119 = por %p117, %p118
      %p120 = scmp.ne.s32.totalorder %s112, %s115
      %p121 = scmp.eq.s32.totalorder %s13, 0
      %p122 = por %p120, %p121
      %p123 = scmp.ne.s32.totalorder %s112, %s115
      %p124 = scmp.eq.s32.totalorder %s18, 1
      %p125 = por %p123, %p124
      %p126 = scmp.ne.s32.totalorder %s115, %s116
      %p127 = scmp.eq.s32.totalorder %s18, 0
      %p128 = por %p126, %p127
      %p129 = scmp.ne.s32.totalorder %s115, %s116
      %p130 = scmp.eq.s32.totalorder %s19, 1
      %p131 = por %p129, %p130
      %p133 = scmp.ne.s32.totalorder %s116, %s132
      %p134 = scmp.eq.s32.totalorder %s19, 0
      %p135 = por %p133, %p134
      %p136 = scmp.le.s32.totalorder 1, %s13
      %p137 = scmp.lt.s32.totalorder %s13, 3
      %p138 = pnand %p136, %p137
      %p139 = pneg %p138
      // Predicated region
      $region9: #{forward.3} parent=5 // pred_check
        _
      $region10: #{forward.3} parent=5 // pred_check_branch
        %141 = sbr.rel (%p138) target = $region12
      $region11: #{forward.3} parent=5 // pred_region
        %s142 = ssub.s32 %s13, 1
        // Predicated region
        $region13: #{forward.3} parent=11 // pred_check
          %p143 = pneg %p60
        $region14: #{forward.3} parent=11 // pred_check_branch
          %145 = sbr.rel (%p143) target = $region16
        $region15: #{forward.3} parent=11 // pred_region
          _
        $region16: #{forward.3} parent=11 // pred_fallthru
          _
        // Predicated region
        $region17: #{forward.3} parent=11 // pred_check
          %p146 = pneg %p81
        $region18: #{forward.3} parent=11 // pred_check_branch
          %148 = sbr.rel (%p146) target = $region20
        $region19: #{forward.3} parent=11 // pred_region
          _
        $region20: #{forward.3} parent=11 // pred_fallthru
          _
        // Predicated region
        $region21: #{forward.3} parent=11 // pred_check
          %p149 = pneg %p102
        $region22: #{forward.3} parent=11 // pred_check_branch
          %151 = sbr.rel (%p149) target = $region24
        $region23: #{forward.3} parent=11 // pred_region
          _
        $region24: #{forward.3} parent=11 // pred_fallthru
          _
      $region12: #{forward.3} parent=5 // pred_fallthru
        _
      %p152 = scmp.lt.s32.totalorder %s13, 2
      // Predicated region
      $region25: #{forward.3} parent=5 // pred_check
        %p153 = pneg %p152
      $region26: #{forward.3} parent=5 // pred_check_branch
        %155 = sbr.rel (%p153) target = $region28
      $region27: #{forward.3} parent=5 // pred_region
        // Predicated region
        $region29: #{forward.3} parent=27 // pred_check
          %p156 = pneg %p33
        $region30: #{forward.3} parent=27 // pred_check_branch
          %158 = sbr.rel (%p156) target = $region32
        $region31: #{forward.3} parent=27 // pred_region
          %p159 = scmp.lt.s32.totalorder %s13, 1
          %s160 = scalar_select %p159, %s13, 1
          %s161 = smul.addr %s160, 76
          %s162 = smul.addr %s161, 8
          %s163 = scalar_lea.vmem %s0, %s162
        $region32: #{forward.3} parent=27 // pred_fallthru
          _
      $region28: #{forward.3} parent=5 // pred_fallthru
        _
      %p164 = scmp.le.s32.totalorder 1, %s13
      %p165 = scmp.lt.s32.totalorder %s13, 3
      %p166 = pnand %p164, %p165
      %p167 = pneg %p166
      // Predicated region
      $region33: #{forward.3} parent=5 // pred_check
        _
      $region34: #{forward.3} parent=5 // pred_check_branch
        %169 = sbr.rel (%p166) target = $region36
      $region35: #{forward.3} parent=5 // pred_region
        %s170 = ssub.s32 %s13, 1
        %p171 = scmp.lt.s32.totalorder %s18, 1
        %s172 = scalar_select %p171, %s18, 1
        %s173 = smul.addr %s172, 76
        %s174 = smul.addr %s173, 8
        %s175 = scalar_lea.vmem %s0, %s174
        %p176 = pneg %p39
        %p177 = pneg %p36
        %p178 = pneg %p60
        %p179 = pneg %p57
        %p180 = pneg %p81
        %p181 = pneg %p78
        %p182 = pneg %p102
        %p183 = pneg %p99
        %p184 = pneg %p128
        %p185 = pneg %p125
        %s186 = sand.u32 %s115, 1
        %s187 = scalar_lea.sflag [#allocation3], %s186
        %s188 = sand.u32 %s115, 1
        %s189 = scalar_lea.vmem [#allocation2], %s188
        %p190 = scmp.lt.s32.totalorder %s18, 1
        %s191 = scalar_select %p190, %s18, 1
        %s192 = smul.addr %s191, 76
        %s193 = smul.addr %s192, 8
        %s194 = scalar_lea.vmem %s0, %s193
        %v195 = vld [vmem:[%s1] sm:$0xff]
        %v196 = vld [vmem:[%s1 + $0x8] sm:$0xff]
        %v197 = vld [vmem:[%s1 + $0x10] sm:$0xff]
        %v198 = vld [vmem:[%s1 + $0x18] sm:$0xff]
        %v199 = vld [vmem:[%s194] sm:$0xff]
        %v200 = vld [vmem:[%s194 + $0x8] sm:$0xff]
        %v201 = vld [vmem:[%s194 + $0x10] sm:$0xff]
        %v202 = vld [vmem:[%s194 + $0x18] sm:$0xff]
        %v203 = vld [vmem:[%s194 + $0x20] sm:$0xff]
        %v204 = vld [vmem:[%s194 + $0x28] sm:$0xff]
        %v205 = vld [vmem:[%s194 + $0x30] sm:$0xff]
        %v206 = vld [vmem:[%s194 + $0x38] sm:$0xff]
        %v207 = vld [vmem:[%s194 + $0x40] sm:$0xff]
        %v208 = vld [vmem:[%s194 + $0x48] sm:$0xff]
        %v209 = vld [vmem:[%s194 + $0x50] sm:$0xff]
        %v210 = vld [vmem:[%s194 + $0x58] sm:$0xff]
        %v211 = vld [vmem:[%s194 + $0x60] sm:$0xff]
        %v212 = vld [vmem:[%s194 + $0x68] sm:$0xff]
        %v213 = vld [vmem:[%s194 + $0x70] sm:$0xff]
        %v214 = vld [vmem:[%s194 + $0x78] sm:$0xff]
        %v215 = vld [vmem:[%s194 + $0x80] sm:$0xff]
        %v216 = vld [vmem:[%s194 + $0x88] sm:$0xff]
        %v217 = vld [vmem:[%s194 + $0x90] sm:$0x3f]
        %vm218 = vcmask 179200
        %v220 = vsel %vm218, %v196, 0
        %v223 = vsel %vm218, %v198, 0
        %vm225 = vcmask 1045504
        %v227 = vsel %vm225, %v217, 0
        %229 = vmatpush.msra.mxu0 %v214
        %230 = vmatpush.msra.mxu0 %v213
        %231 = vmatpush.msra.mxu0 %v212
        %232 = vmatpush.msra.mxu0 %v211
        %233 = vmatpush.msra.mxu0 %v210
        %234 = vmatpush.msra.mxu0 %v209
        %235 = vmatpush.msra.mxu0 %v208
        %236 = vmatpush.msra.mxu0 %v207
        %237 = vmatpush.msra.mxu0 %v206
        %238 = vmatpush.msra.mxu0 %v205
        %239 = vmatpush.msra.mxu0 %v204
        %240 = vmatpush.msra.mxu0 %v203
        %241 = vmatpush.msra.mxu0 %v202
        %242 = vmatpush.msra.mxu0 %v201
        %243 = vmatpush.msra.mxu0 %v200
        %244 = vmatpush.msra.mxu0 %v199
        %245 = vmatmul.f32.gmra.mxu0 %v195
        %v246 = vpop.f32.mrf.mxu0
        %v247 = vadd.f32 0.0, %v246
        %248 = vmatmul.f32.gmra.mxu0 %v197
        %v249 = vpop.f32.mrf.mxu0
        %v250 = vadd.f32 0.0, %v249
        %251 = vdwg.mxu0
        %252 = vmatpush.msra.mxu0 0.0
        %253 = vmatpush.msra.mxu0 0.0
        %254 = vmatpush.msra.mxu0 0.0
        %255 = vmatpush.msra.mxu0 0.0
        %256 = vmatpush.msra.mxu0 0.0
        %257 = vmatpush.msra.mxu0 0.0
        %258 = vmatpush.msra.mxu0 0.0
        %259 = vmatpush.msra.mxu0 0.0
        %260 = vmatpush.msra.mxu0 0.0
        %261 = vmatpush.msra.mxu0 0.0
        %262 = vmatpush.msra.mxu0 0.0
        %263 = vmatpush.msra.mxu0 0.0
        %264 = vmatpush.msra.mxu0 0.0
        %265 = vmatpush.msra.mxu0 %v227
        %266 = vmatpush.msra.mxu0 %v216
        %267 = vmatpush.msra.mxu0 %v215
        %268 = vmatmul.f32.gmra.mxu0 %v220
        %v269 = vpop.f32.mrf.mxu0
        %v270 = vadd.f32 %v247, %v269
        %271 = vmatmul.f32.gmra.mxu0 %v223
        %v272 = vpop.f32.mrf.mxu0
        %v273 = vadd.f32 %v250, %v272
        %274 = vdwg.mxu0
        %s275 = scalar_lea.vmem %s194, 152
        %v276 = vld [vmem:[%s275] sm:$0xff]
        %v277 = vld [vmem:[%s275 + $0x8] sm:$0xff]
        %v278 = vld [vmem:[%s275 + $0x10] sm:$0xff]
        %v279 = vld [vmem:[%s275 + $0x18] sm:$0xff]
        %v280 = vld [vmem:[%s275 + $0x20] sm:$0xff]
        %v281 = vld [vmem:[%s275 + $0x28] sm:$0xff]
        %v282 = vld [vmem:[%s275 + $0x30] sm:$0xff]
        %v283 = vld [vmem:[%s275 + $0x38] sm:$0xff]
        %v284 = vld [vmem:[%s275 + $0x40] sm:$0xff]
        %v285 = vld [vmem:[%s275 + $0x48] sm:$0xff]
        %v286 = vld [vmem:[%s275 + $0x50] sm:$0xff]
        %v287 = vld [vmem:[%s275 + $0x58] sm:$0xff]
        %v288 = vld [vmem:[%s275 + $0x60] sm:$0xff]
        %v289 = vld [vmem:[%s275 + $0x68] sm:$0xff]
        %v290 = vld [vmem:[%s275 + $0x70] sm:$0xff]
        %v291 = vld [vmem:[%s275 + $0x78] sm:$0xff]
        %v292 = vld [vmem:[%s275 + $0x80] sm:$0xff]
        %v293 = vld [vmem:[%s275 + $0x88] sm:$0xff]
        %v294 = vld [vmem:[%s275 + $0x90] sm:$0x3f]
        %v296 = vsel %vm225, %v294, 0
        %298 = vmatpush.msra.mxu0 %v291
        %299 = vmatpush.msra.mxu0 %v290
        %300 = vmatpush.msra.mxu0 %v289
        %301 = vmatpush.msra.mxu0 %v288
        %302 = vmatpush.msra.mxu0 %v287
        %303 = vmatpush.msra.mxu0 %v286
        %304 = vmatpush.msra.mxu0 %v285
        %305 = vmatpush.msra.mxu0 %v284
        %306 = vmatpush.msra.mxu0 %v283
        %307 = vmatpush.msra.mxu0 %v282
        %308 = vmatpush.msra.mxu0 %v281
        %309 = vmatpush.msra.mxu0 %v280
        %310 = vmatpush.msra.mxu0 %v279
        %311 = vmatpush.msra.mxu0 %v278
        %312 = vmatpush.msra.mxu0 %v277
        %313 = vmatpush.msra.mxu0 %v276
        %314 = vmatmul.f32.gmra.mxu0 %v195
        %v315 = vpop.f32.mrf.mxu0
        %v316 = vadd.f32 0.0, %v315
        %317 = vmatmul.f32.gmra.mxu0 %v197
        %v318 = vpop.f32.mrf.mxu0
        %v319 = vadd.f32 0.0, %v318
        %320 = vdwg.mxu0
        %321 = vmatpush.msra.mxu0 0.0
        %322 = vmatpush.msra.mxu0 0.0
        %323 = vmatpush.msra.mxu0 0.0
        %324 = vmatpush.msra.mxu0 0.0
        %325 = vmatpush.msra.mxu0 0.0
        %326 = vmatpush.msra.mxu0 0.0
        %327 = vmatpush.msra.mxu0 0.0
        %328 = vmatpush.msra.mxu0 0.0
        %329 = vmatpush.msra.mxu0 0.0
        %330 = vmatpush.msra.mxu0 0.0
        %331 = vmatpush.msra.mxu0 0.0
        %332 = vmatpush.msra.mxu0 0.0
        %333 = vmatpush.msra.mxu0 0.0
        %334 = vmatpush.msra.mxu0 %v296
        %335 = vmatpush.msra.mxu0 %v293
        %336 = vmatpush.msra.mxu0 %v292
        %337 = vmatmul.f32.gmra.mxu0 %v220
        %v338 = vpop.f32.mrf.mxu0
        %v339 = vadd.f32 %v316, %v338
        %340 = vmatmul.f32.gmra.mxu0 %v223
        %v341 = vpop.f32.mrf.mxu0
        %v342 = vadd.f32 %v319, %v341
        %343 = vdwg.mxu0
        %v344 = vmax.f32 %v270, %v339
        %v345 = vmax.f32 %v273, %v342
        %s346 = scalar_lea.vmem %s194, 304
        %v347 = vld [vmem:[%s346] sm:$0xff]
        %v348 = vld [vmem:[%s346 + $0x8] sm:$0xff]
        %v349 = vld [vmem:[%s346 + $0x10] sm:$0xff]
        %v350 = vld [vmem:[%s346 + $0x18] sm:$0xff]
        %v351 = vld [vmem:[%s346 + $0x20] sm:$0xff]
        %v352 = vld [vmem:[%s346 + $0x28] sm:$0xff]
        %v353 = vld [vmem:[%s346 + $0x30] sm:$0xff]
        %v354 = vld [vmem:[%s346 + $0x38] sm:$0xff]
        %v355 = vld [vmem:[%s346 + $0x40] sm:$0xff]
        %v356 = vld [vmem:[%s346 + $0x48] sm:$0xff]
        %v357 = vld [vmem:[%s346 + $0x50] sm:$0xff]
        %v358 = vld [vmem:[%s346 + $0x58] sm:$0xff]
        %v359 = vld [vmem:[%s346 + $0x60] sm:$0xff]
        %v360 = vld [vmem:[%s346 + $0x68] sm:$0xff]
        %v361 = vld [vmem:[%s346 + $0x70] sm:$0xff]
        %v362 = vld [vmem:[%s346 + $0x78] sm:$0xff]
        %v363 = vld [vmem:[%s346 + $0x80] sm:$0xff]
        %v364 = vld [vmem:[%s346 + $0x88] sm:$0xff]
        %v365 = vld [vmem:[%s346 + $0x90] sm:$0x3f]
        %v367 = vsel %vm225, %v365, 0
        %369 = vmatpush.msra.mxu0 %v362
        %370 = vmatpush.msra.mxu0 %v361
        %371 = vmatpush.msra.mxu0 %v360
        %372 = vmatpush.msra.mxu0 %v359
        %373 = vmatpush.msra.mxu0 %v358
        %374 = vmatpush.msra.mxu0 %v357
        %375 = vmatpush.msra.mxu0 %v356
        %376 = vmatpush.msra.mxu0 %v355
        %377 = vmatpush.msra.mxu0 %v354
        %378 = vmatpush.msra.mxu0 %v353
        %379 = vmatpush.msra.mxu0 %v352
        %380 = vmatpush.msra.mxu0 %v351
        %381 = vmatpush.msra.mxu0 %v350
        %382 = vmatpush.msra.mxu0 %v349
        %383 = vmatpush.msra.mxu0 %v348
        %384 = vmatpush.msra.mxu0 %v347
        %385 = vmatmul.f32.gmra.mxu0 %v195
        %v386 = vpop.f32.mrf.mxu0
        %v387 = vadd.f32 0.0, %v386
        %388 = vmatmul.f32.gmra.mxu0 %v197
        %v389 = vpop.f32.mrf.mxu0
        %v390 = vadd.f32 0.0, %v389
        %391 = vdwg.mxu0
        %392 = vmatpush.msra.mxu0 0.0
        %393 = vmatpush.msra.mxu0 0.0
        %394 = vmatpush.msra.mxu0 0.0
        %395 = vmatpush.msra.mxu0 0.0
        %396 = vmatpush.msra.mxu0 0.0
        %397 = vmatpush.msra.mxu0 0.0
        %398 = vmatpush.msra.mxu0 0.0
        %399 = vmatpush.msra.mxu0 0.0
        %400 = vmatpush.msra.mxu0 0.0
        %401 = vmatpush.msra.mxu0 0.0
        %402 = vmatpush.msra.mxu0 0.0
        %403 = vmatpush.msra.mxu0 0.0
        %404 = vmatpush.msra.mxu0 0.0
        %405 = vmatpush.msra.mxu0 %v367
        %406 = vmatpush.msra.mxu0 %v364
        %407 = vmatpush.msra.mxu0 %v363
        %408 = vmatmul.f32.gmra.mxu0 %v220
        %v409 = vpop.f32.mrf.mxu0
        %v410 = vadd.f32 %v387, %v409
        %411 = vmatmul.f32.gmra.mxu0 %v223
        %v412 = vpop.f32.mrf.mxu0
        %v413 = vadd.f32 %v390, %v412
        %414 = vdwg.mxu0
        %s415 = scalar_lea.vmem %s194, 456
        %v416 = vld [vmem:[%s415] sm:$0xff]
        %v417 = vld [vmem:[%s415 + $0x8] sm:$0xff]
        %v418 = vld [vmem:[%s415 + $0x10] sm:$0xff]
        %v419 = vld [vmem:[%s415 + $0x18] sm:$0xff]
        %v420 = vld [vmem:[%s415 + $0x20] sm:$0xff]
        %v421 = vld [vmem:[%s415 + $0x28] sm:$0xff]
        %v422 = vld [vmem:[%s415 + $0x30] sm:$0xff]
        %v423 = vld [vmem:[%s415 + $0x38] sm:$0xff]
        %v424 = vld [vmem:[%s415 + $0x40] sm:$0xff]
        %v425 = vld [vmem:[%s415 + $0x48] sm:$0xff]
        %v426 = vld [vmem:[%s415 + $0x50] sm:$0xff]
        %v427 = vld [vmem:[%s415 + $0x58] sm:$0xff]
        %v428 = vld [vmem:[%s415 + $0x60] sm:$0xff]
        %v429 = vld [vmem:[%s415 + $0x68] sm:$0xff]
        %v430 = vld [vmem:[%s415 + $0x70] sm:$0xff]
        %v431 = vld [vmem:[%s415 + $0x78] sm:$0xff]
        %v432 = vld [vmem:[%s415 + $0x80] sm:$0xff]
        %v433 = vld [vmem:[%s415 + $0x88] sm:$0xff]
        %v434 = vld [vmem:[%s415 + $0x90] sm:$0x3f]
        %v436 = vsel %vm225, %v434, 0
        %438 = vmatpush.msra.mxu0 %v431
        %439 = vmatpush.msra.mxu0 %v430
        %440 = vmatpush.msra.mxu0 %v429
        %441 = vmatpush.msra.mxu0 %v428
        %442 = vmatpush.msra.mxu0 %v427
        %443 = vmatpush.msra.mxu0 %v426
        %444 = vmatpush.msra.mxu0 %v425
        %445 = vmatpush.msra.mxu0 %v424
        %446 = vmatpush.msra.mxu0 %v423
        %447 = vmatpush.msra.mxu0 %v422
        %448 = vmatpush.msra.mxu0 %v421
        %449 = vmatpush.msra.mxu0 %v420
        %450 = vmatpush.msra.mxu0 %v419
        %451 = vmatpush.msra.mxu0 %v418
        %452 = vmatpush.msra.mxu0 %v417
        %453 = vmatpush.msra.mxu0 %v416
        %454 = vmatmul.f32.gmra.mxu0 %v195
        %v455 = vpop.f32.mrf.mxu0
        %v456 = vadd.f32 0.0, %v455
        %457 = vmatmul.f32.gmra.mxu0 %v197
        %v458 = vpop.f32.mrf.mxu0
        %v459 = vadd.f32 0.0, %v458
        %460 = vdwg.mxu0
        %461 = vmatpush.msra.mxu0 0.0
        %462 = vmatpush.msra.mxu0 0.0
        %463 = vmatpush.msra.mxu0 0.0
        %464 = vmatpush.msra.mxu0 0.0
        %465 = vmatpush.msra.mxu0 0.0
        %466 = vmatpush.msra.mxu0 0.0
        %467 = vmatpush.msra.mxu0 0.0
        %468 = vmatpush.msra.mxu0 0.0
        %469 = vmatpush.msra.mxu0 0.0
        %470 = vmatpush.msra.mxu0 0.0
        %471 = vmatpush.msra.mxu0 0.0
        %472 = vmatpush.msra.mxu0 0.0
        %473 = vmatpush.msra.mxu0 0.0
        %474 = vmatpush.msra.mxu0 %v436
        %475 = vmatpush.msra.mxu0 %v433
        %476 = vmatpush.msra.mxu0 %v432
        %477 = vmatmul.f32.gmra.mxu0 %v220
        %v478 = vpop.f32.mrf.mxu0
        %v479 = vadd.f32 %v456, %v478
        %480 = vmatmul.f32.gmra.mxu0 %v223
        %v481 = vpop.f32.mrf.mxu0
        %v482 = vadd.f32 %v459, %v481
        %483 = vdwg.mxu0
        %v484 = vmax.f32 %v410, %v479
        %v485 = vmax.f32 %v413, %v482
        %v486 = vmax.f32 %v344, %v484
        %v487 = vmax.f32 %v345, %v485
        %488 = vset.pattern.permute.xlu0 22
        %489 = vperm.xlu0 %488, %v196
        %v490 = vpop.permute.xlu0 %489
        %492 = vset.pattern.permute.xlu0 22
        %493 = vperm.xlu0 %492, %v198
        %v494 = vpop.permute.xlu0 %493
        %v496 = vadd.f32 %v486, %v490
        %v497 = vadd.f32 %v487, %v494
        %v498 = vmax.f32 %v496, 0.0
        %v499 = vmax.f32 %v497, 0.0
        %v500 = vld [vmem:[%s3] sm:$0x1]
        %v501 = vld [vmem:[%s2] sm:$0xff]
        %v502 = vld [vmem:[%s2 + $0x8] sm:$0xff]
        %v503 = vld [vmem:[%s2 + $0x10] sm:$0xff]
        %v504 = vld [vmem:[%s2 + $0x18] sm:$0x1]
        %vm505 = vcmask 203776
        %v507 = vsel %vm505, %v498, 0
        %vm509 = vcmask 1040384
        %v511 = vsel %vm509, %v504, 0
        %513 = vmatpush.msra.mxu0 0.0
        %514 = vmatpush.msra.mxu0 0.0
        %515 = vmatpush.msra.mxu0 0.0
        %516 = vmatpush.msra.mxu0 0.0
        %517 = vmatpush.msra.mxu0 0.0
        %518 = vmatpush.msra.mxu0 0.0
        %519 = vmatpush.msra.mxu0 0.0
        %520 = vmatpush.msra.mxu0 0.0
        %521 = vmatpush.msra.mxu0 0.0
        %522 = vmatpush.msra.mxu0 0.0
        %523 = vmatpush.msra.mxu0 0.0
        %524 = vmatpush.msra.mxu0 0.0
        %525 = vmatpush.msra.mxu0 %v511
        %526 = vmatpush.msra.mxu0 %v503
        %527 = vmatpush.msra.mxu0 %v502
        %528 = vmatpush.msra.mxu0 %v501
        %529 = vmatmul.f32.gmra.mxu0 %v507
        %v530 = vpop.f32.mrf.mxu0
        %v531 = vadd.f32 0.0, %v530
        %532 = vdwg.mxu0
        %v533 = vadd.f32 %v500, %v531
        %s534 = scalar_lea.vmem %s2, 32
        %v535 = vld [vmem:[%s534] sm:$0xff]
        %v536 = vld [vmem:[%s534 + $0x8] sm:$0xff]
        %v537 = vld [vmem:[%s534 + $0x10] sm:$0xff]
        %v538 = vld [vmem:[%s534 + $0x18] sm:$0x1]
        %v539 = vrot.slane %v498, 1
        %v540 = vsel %vm505, %v539, 0
        %v543 = vsel %vm509, %v538, 0
        %545 = vmatpush.msra.mxu0 0.0
        %546 = vmatpush.msra.mxu0 0.0
        %547 = vmatpush.msra.mxu0 0.0
        %548 = vmatpush.msra.mxu0 0.0
        %549 = vmatpush.msra.mxu0 0.0
        %550 = vmatpush.msra.mxu0 0.0
        %551 = vmatpush.msra.mxu0 0.0
        %552 = vmatpush.msra.mxu0 0.0
        %553 = vmatpush.msra.mxu0 0.0
        %554 = vmatpush.msra.mxu0 0.0
        %555 = vmatpush.msra.mxu0 0.0
        %556 = vmatpush.msra.mxu0 0.0
        %557 = vmatpush.msra.mxu0 %v543
        %558 = vmatpush.msra.mxu0 %v537
        %559 = vmatpush.msra.mxu0 %v536
        %560 = vmatpush.msra.mxu0 %v535
        %561 = vmatmul.f32.gmra.mxu0 %v540
        %v562 = vpop.f32.mrf.mxu0
        %v563 = vadd.f32 0.0, %v562
        %564 = vdwg.mxu0
        %v565 = vadd.f32 %v533, %v563
        %s566 = scalar_lea.vmem %s2, 64
        %v567 = vld [vmem:[%s566] sm:$0xff]
        %v568 = vld [vmem:[%s566 + $0x8] sm:$0xff]
        %v569 = vld [vmem:[%s566 + $0x10] sm:$0xff]
        %v570 = vld [vmem:[%s566 + $0x18] sm:$0x1]
        %v571 = vrot.slane %v498, 2
        %v572 = vsel %vm505, %v571, 0
        %v575 = vsel %vm509, %v570, 0
        %577 = vmatpush.msra.mxu0 0.0
        %578 = vmatpush.msra.mxu0 0.0
        %579 = vmatpush.msra.mxu0 0.0
        %580 = vmatpush.msra.mxu0 0.0
        %581 = vmatpush.msra.mxu0 0.0
        %582 = vmatpush.msra.mxu0 0.0
        %583 = vmatpush.msra.mxu0 0.0
        %584 = vmatpush.msra.mxu0 0.0
        %585 = vmatpush.msra.mxu0 0.0
        %586 = vmatpush.msra.mxu0 0.0
        %587 = vmatpush.msra.mxu0 0.0
        %588 = vmatpush.msra.mxu0 0.0
        %589 = vmatpush.msra.mxu0 %v575
        %590 = vmatpush.msra.mxu0 %v569
        %591 = vmatpush.msra.mxu0 %v568
        %592 = vmatpush.msra.mxu0 %v567
        %593 = vmatmul.f32.gmra.mxu0 %v572
        %v594 = vpop.f32.mrf.mxu0
        %v595 = vadd.f32 0.0, %v594
        %596 = vdwg.mxu0
        %v597 = vadd.f32 %v565, %v595
        %s598 = scalar_lea.vmem %s2, 96
        %v599 = vld [vmem:[%s598] sm:$0xff]
        %v600 = vld [vmem:[%s598 + $0x8] sm:$0xff]
        %v601 = vld [vmem:[%s598 + $0x10] sm:$0xff]
        %v602 = vld [vmem:[%s598 + $0x18] sm:$0x1]
        %v603 = vrot.slane %v498, 3
        %v604 = vsel %vm505, %v603, 0
        %v607 = vsel %vm509, %v602, 0
        %609 = vmatpush.msra.mxu0 0.0
        %610 = vmatpush.msra.mxu0 0.0
        %611 = vmatpush.msra.mxu0 0.0
        %612 = vmatpush.msra.mxu0 0.0
        %613 = vmatpush.msra.mxu0 0.0
        %614 = vmatpush.msra.mxu0 0.0
        %615 = vmatpush.msra.mxu0 0.0
        %616 = vmatpush.msra.mxu0 0.0
        %617 = vmatpush.msra.mxu0 0.0
        %618 = vmatpush.msra.mxu0 0.0
        %619 = vmatpush.msra.mxu0 0.0
        %620 = vmatpush.msra.mxu0 0.0
        %621 = vmatpush.msra.mxu0 %v607
        %622 = vmatpush.msra.mxu0 %v601
        %623 = vmatpush.msra.mxu0 %v600
        %624 = vmatpush.msra.mxu0 %v599
        %625 = vmatmul.f32.gmra.mxu0 %v604
        %v626 = vpop.f32.mrf.mxu0
        %v627 = vadd.f32 0.0, %v626
        %628 = vdwg.mxu0
        %v629 = vadd.f32 %v597, %v627
        %s630 = scalar_lea.vmem %s2, 128
        %v631 = vld [vmem:[%s630] sm:$0xff]
        %v632 = vld [vmem:[%s630 + $0x8] sm:$0xff]
        %v633 = vld [vmem:[%s630 + $0x10] sm:$0xff]
        %v634 = vld [vmem:[%s630 + $0x18] sm:$0x1]
        %v635 = vrot.slane %v498, 4
        %v636 = vsel %vm505, %v635, 0
        %v639 = vsel %vm509, %v634, 0
        %641 = vmatpush.msra.mxu0 0.0
        %642 = vmatpush.msra.mxu0 0.0
        %643 = vmatpush.msra.mxu0 0.0
        %644 = vmatpush.msra.mxu0 0.0
        %645 = vmatpush.msra.mxu0 0.0
        %646 = vmatpush.msra.mxu0 0.0
        %647 = vmatpush.msra.mxu0 0.0
        %648 = vmatpush.msra.mxu0 0.0
        %649 = vmatpush.msra.mxu0 0.0
        %650 = vmatpush.msra.mxu0 0.0
        %651 = vmatpush.msra.mxu0 0.0
        %652 = vmatpush.msra.mxu0 0.0
        %653 = vmatpush.msra.mxu0 %v639
        %654 = vmatpush.msra.mxu0 %v633
        %655 = vmatpush.msra.mxu0 %v632
        %656 = vmatpush.msra.mxu0 %v631
        %657 = vmatmul.f32.gmra.mxu0 %v636
        %v658 = vpop.f32.mrf.mxu0
        %v659 = vadd.f32 0.0, %v658
        %660 = vdwg.mxu0
        %v661 = vadd.f32 %v629, %v659
        %s662 = scalar_lea.vmem %s2, 160
        %v663 = vld [vmem:[%s662] sm:$0xff]
        %v664 = vld [vmem:[%s662 + $0x8] sm:$0xff]
        %v665 = vld [vmem:[%s662 + $0x10] sm:$0xff]
        %v666 = vld [vmem:[%s662 + $0x18] sm:$0x1]
        %v667 = vrot.slane %v498, 5
        %v668 = vsel %vm505, %v667, 0
        %v671 = vsel %vm509, %v666, 0
        %673 = vmatpush.msra.mxu0 0.0
        %674 = vmatpush.msra.mxu0 0.0
        %675 = vmatpush.msra.mxu0 0.0
        %676 = vmatpush.msra.mxu0 0.0
        %677 = vmatpush.msra.mxu0 0.0
        %678 = vmatpush.msra.mxu0 0.0
        %679 = vmatpush.msra.mxu0 0.0
        %680 = vmatpush.msra.mxu0 0.0
        %681 = vmatpush.msra.mxu0 0.0
        %682 = vmatpush.msra.mxu0 0.0
        %683 = vmatpush.msra.mxu0 0.0
        %684 = vmatpush.msra.mxu0 0.0
        %685 = vmatpush.msra.mxu0 %v671
        %686 = vmatpush.msra.mxu0 %v665
        %687 = vmatpush.msra.mxu0 %v664
        %688 = vmatpush.msra.mxu0 %v663
        %689 = vmatmul.f32.gmra.mxu0 %v668
        %v690 = vpop.f32.mrf.mxu0
        %v691 = vadd.f32 0.0, %v690
        %692 = vdwg.mxu0
        %v693 = vadd.f32 %v661, %v691
        %s694 = scalar_lea.vmem %s2, 192
        %v695 = vld [vmem:[%s694] sm:$0xff]
        %v696 = vld [vmem:[%s694 + $0x8] sm:$0xff]
        %v697 = vld [vmem:[%s694 + $0x10] sm:$0xff]
        %v698 = vld [vmem:[%s694 + $0x18] sm:$0x1]
        %v699 = vrot.slane %v498, 6
        %v700 = vsel %vm505, %v699, 0
        %v703 = vsel %vm509, %v698, 0
        %705 = vmatpush.msra.mxu0 0.0
        %706 = vmatpush.msra.mxu0 0.0
        %707 = vmatpush.msra.mxu0 0.0
        %708 = vmatpush.msra.mxu0 0.0
        %709 = vmatpush.msra.mxu0 0.0
        %710 = vmatpush.msra.mxu0 0.0
        %711 = vmatpush.msra.mxu0 0.0
        %712 = vmatpush.msra.mxu0 0.0
        %713 = vmatpush.msra.mxu0 0.0
        %714 = vmatpush.msra.mxu0 0.0
        %715 = vmatpush.msra.mxu0 0.0
        %716 = vmatpush.msra.mxu0 0.0
        %717 = vmatpush.msra.mxu0 %v703
        %718 = vmatpush.msra.mxu0 %v697
        %719 = vmatpush.msra.mxu0 %v696
        %720 = vmatpush.msra.mxu0 %v695
        %721 = vmatmul.f32.gmra.mxu0 %v700
        %v722 = vpop.f32.mrf.mxu0
        %v723 = vadd.f32 0.0, %v722
        %724 = vdwg.mxu0
        %v725 = vadd.f32 %v693, %v723
        %s726 = scalar_lea.vmem %s2, 224
        %v727 = vld [vmem:[%s726] sm:$0xff]
        %v728 = vld [vmem:[%s726 + $0x8] sm:$0xff]
        %v729 = vld [vmem:[%s726 + $0x10] sm:$0xff]
        %v730 = vld [vmem:[%s726 + $0x18] sm:$0x1]
        %v731 = vrot.slane %v498, 7
        %v732 = vsel %vm505, %v731, 0
        %v735 = vsel %vm509, %v730, 0
        %737 = vmatpush.msra.mxu0 0.0
        %738 = vmatpush.msra.mxu0 0.0
        %739 = vmatpush.msra.mxu0 0.0
        %740 = vmatpush.msra.mxu0 0.0
        %741 = vmatpush.msra.mxu0 0.0
        %742 = vmatpush.msra.mxu0 0.0
        %743 = vmatpush.msra.mxu0 0.0
        %744 = vmatpush.msra.mxu0 0.0
        %745 = vmatpush.msra.mxu0 0.0
        %746 = vmatpush.msra.mxu0 0.0
        %747 = vmatpush.msra.mxu0 0.0
        %748 = vmatpush.msra.mxu0 0.0
        %749 = vmatpush.msra.mxu0 %v735
        %750 = vmatpush.msra.mxu0 %v729
        %751 = vmatpush.msra.mxu0 %v728
        %752 = vmatpush.msra.mxu0 %v727
        %753 = vmatmul.f32.gmra.mxu0 %v732
        %v754 = vpop.f32.mrf.mxu0
        %v755 = vadd.f32 0.0, %v754
        %756 = vdwg.mxu0
        %v757 = vadd.f32 %v725, %v755
        %s758 = scalar_lea.vmem %s2, 256
        %v759 = vld [vmem:[%s758] sm:$0xff]
        %v760 = vld [vmem:[%s758 + $0x8] sm:$0xff]
        %v761 = vld [vmem:[%s758 + $0x10] sm:$0xff]
        %v762 = vld [vmem:[%s758 + $0x18] sm:$0x1]
        %v764 = vsel %vm505, %v499, 0
        %v767 = vsel %vm509, %v762, 0
        %769 = vmatpush.msra.mxu0 0.0
        %770 = vmatpush.msra.mxu0 0.0
        %771 = vmatpush.msra.mxu0 0.0
        %772 = vmatpush.msra.mxu0 0.0
        %773 = vmatpush.msra.mxu0 0.0
        %774 = vmatpush.msra.mxu0 0.0
        %775 = vmatpush.msra.mxu0 0.0
        %776 = vmatpush.msra.mxu0 0.0
        %777 = vmatpush.msra.mxu0 0.0
        %778 = vmatpush.msra.mxu0 0.0
        %779 = vmatpush.msra.mxu0 0.0
        %780 = vmatpush.msra.mxu0 0.0
        %781 = vmatpush.msra.mxu0 %v767
        %782 = vmatpush.msra.mxu0 %v761
        %783 = vmatpush.msra.mxu0 %v760
        %784 = vmatpush.msra.mxu0 %v759
        %785 = vmatmul.f32.gmra.mxu0 %v764
        %v786 = vpop.f32.mrf.mxu0
        %v787 = vadd.f32 0.0, %v786
        %788 = vdwg.mxu0
        %v789 = vadd.f32 %v757, %v787
        %s790 = scalar_lea.vmem %s2, 288
        %v791 = vld [vmem:[%s790] sm:$0xff]
        %v792 = vld [vmem:[%s790 + $0x8] sm:$0xff]
        %v793 = vld [vmem:[%s790 + $0x10] sm:$0xff]
        %v794 = vld [vmem:[%s790 + $0x18] sm:$0x1]
        %v795 = vrot.slane %v499, 1
        %v796 = vsel %vm505, %v795, 0
        %v799 = vsel %vm509, %v794, 0
        %801 = vmatpush.msra.mxu0 0.0
        %802 = vmatpush.msra.mxu0 0.0
        %803 = vmatpush.msra.mxu0 0.0
        %804 = vmatpush.msra.mxu0 0.0
        %805 = vmatpush.msra.mxu0 0.0
        %806 = vmatpush.msra.mxu0 0.0
        %807 = vmatpush.msra.mxu0 0.0
        %808 = vmatpush.msra.mxu0 0.0
        %809 = vmatpush.msra.mxu0 0.0
        %810 = vmatpush.msra.mxu0 0.0
        %811 = vmatpush.msra.mxu0 0.0
        %812 = vmatpush.msra.mxu0 0.0
        %813 = vmatpush.msra.mxu0 %v799
        %814 = vmatpush.msra.mxu0 %v793
        %815 = vmatpush.msra.mxu0 %v792
        %816 = vmatpush.msra.mxu0 %v791
        %817 = vmatmul.f32.gmra.mxu0 %v796
        %v818 = vpop.f32.mrf.mxu0
        %v819 = vadd.f32 0.0, %v818
        %820 = vdwg.mxu0
        %v821 = vadd.f32 %v789, %v819
        %s822 = scalar_lea.vmem %s2, 320
        %v823 = vld [vmem:[%s822] sm:$0xff]
        %v824 = vld [vmem:[%s822 + $0x8] sm:$0xff]
        %v825 = vld [vmem:[%s822 + $0x10] sm:$0xff]
        %v826 = vld [vmem:[%s822 + $0x18] sm:$0x1]
        %v827 = vrot.slane %v499, 2
        %v828 = vsel %vm505, %v827, 0
        %v831 = vsel %vm509, %v826, 0
        %833 = vmatpush.msra.mxu0 0.0
        %834 = vmatpush.msra.mxu0 0.0
        %835 = vmatpush.msra.mxu0 0.0
        %836 = vmatpush.msra.mxu0 0.0
        %837 = vmatpush.msra.mxu0 0.0
        %838 = vmatpush.msra.mxu0 0.0
        %839 = vmatpush.msra.mxu0 0.0
        %840 = vmatpush.msra.mxu0 0.0
        %841 = vmatpush.msra.mxu0 0.0
        %842 = vmatpush.msra.mxu0 0.0
        %843 = vmatpush.msra.mxu0 0.0
        %844 = vmatpush.msra.mxu0 0.0
        %845 = vmatpush.msra.mxu0 %v831
        %846 = vmatpush.msra.mxu0 %v825
        %847 = vmatpush.msra.mxu0 %v824
        %848 = vmatpush.msra.mxu0 %v823
        %849 = vmatmul.f32.gmra.mxu0 %v828
        %v850 = vpop.f32.mrf.mxu0
        %v851 = vadd.f32 0.0, %v850
        %852 = vdwg.mxu0
        %v853 = vadd.f32 %v821, %v851
        %s854 = scalar_lea.vmem %s2, 352
        %v855 = vld [vmem:[%s854] sm:$0xff]
        %v856 = vld [vmem:[%s854 + $0x8] sm:$0xff]
        %v857 = vld [vmem:[%s854 + $0x10] sm:$0xff]
        %v858 = vld [vmem:[%s854 + $0x18] sm:$0x1]
        %v859 = vrot.slane %v499, 3
        %v860 = vsel %vm505, %v859, 0
        %v863 = vsel %vm509, %v858, 0
        %865 = vmatpush.msra.mxu0 0.0
        %866 = vmatpush.msra.mxu0 0.0
        %867 = vmatpush.msra.mxu0 0.0
        %868 = vmatpush.msra.mxu0 0.0
        %869 = vmatpush.msra.mxu0 0.0
        %870 = vmatpush.msra.mxu0 0.0
        %871 = vmatpush.msra.mxu0 0.0
        %872 = vmatpush.msra.mxu0 0.0
        %873 = vmatpush.msra.mxu0 0.0
        %874 = vmatpush.msra.mxu0 0.0
        %875 = vmatpush.msra.mxu0 0.0
        %876 = vmatpush.msra.mxu0 0.0
        %877 = vmatpush.msra.mxu0 %v863
        %878 = vmatpush.msra.mxu0 %v857
        %879 = vmatpush.msra.mxu0 %v856
        %880 = vmatpush.msra.mxu0 %v855
        %881 = vmatmul.f32.gmra.mxu0 %v860
        %v882 = vpop.f32.mrf.mxu0
        %v883 = vadd.f32 0.0, %v882
        %884 = vdwg.mxu0
        %v885 = vadd.f32 %v853, %v883
        %s886 = scalar_lea.vmem %s2, 384
        %v887 = vld [vmem:[%s886] sm:$0xff]
        %v888 = vld [vmem:[%s886 + $0x8] sm:$0xff]
        %v889 = vld [vmem:[%s886 + $0x10] sm:$0xff]
        %v890 = vld [vmem:[%s886 + $0x18] sm:$0x1]
        %v891 = vrot.slane %v499, 4
        %v892 = vsel %vm505, %v891, 0
        %v895 = vsel %vm509, %v890, 0
        %897 = vmatpush.msra.mxu0 0.0
        %898 = vmatpush.msra.mxu0 0.0
        %899 = vmatpush.msra.mxu0 0.0
        %900 = vmatpush.msra.mxu0 0.0
        %901 = vmatpush.msra.mxu0 0.0
        %902 = vmatpush.msra.mxu0 0.0
        %903 = vmatpush.msra.mxu0 0.0
        %904 = vmatpush.msra.mxu0 0.0
        %905 = vmatpush.msra.mxu0 0.0
        %906 = vmatpush.msra.mxu0 0.0
        %907 = vmatpush.msra.mxu0 0.0
        %908 = vmatpush.msra.mxu0 0.0
        %909 = vmatpush.msra.mxu0 %v895
        %910 = vmatpush.msra.mxu0 %v889
        %911 = vmatpush.msra.mxu0 %v888
        %912 = vmatpush.msra.mxu0 %v887
        %913 = vmatmul.f32.gmra.mxu0 %v892
        %v914 = vpop.f32.mrf.mxu0
        %v915 = vadd.f32 0.0, %v914
        %916 = vdwg.mxu0
        %v917 = vadd.f32 %v885, %v915
        %s918 = scalar_lea.vmem %s2, 416
        %v919 = vld [vmem:[%s918] sm:$0xff]
        %v920 = vld [vmem:[%s918 + $0x8] sm:$0xff]
        %v921 = vld [vmem:[%s918 + $0x10] sm:$0xff]
        %v922 = vld [vmem:[%s918 + $0x18] sm:$0x1]
        %v923 = vrot.slane %v499, 5
        %v924 = vsel %vm505, %v923, 0
        %v927 = vsel %vm509, %v922, 0
        %929 = vmatpush.msra.mxu0 0.0
        %930 = vmatpush.msra.mxu0 0.0
        %931 = vmatpush.msra.mxu0 0.0
        %932 = vmatpush.msra.mxu0 0.0
        %933 = vmatpush.msra.mxu0 0.0
        %934 = vmatpush.msra.mxu0 0.0
        %935 = vmatpush.msra.mxu0 0.0
        %936 = vmatpush.msra.mxu0 0.0
        %937 = vmatpush.msra.mxu0 0.0
        %938 = vmatpush.msra.mxu0 0.0
        %939 = vmatpush.msra.mxu0 0.0
        %940 = vmatpush.msra.mxu0 0.0
        %941 = vmatpush.msra.mxu0 %v927
        %942 = vmatpush.msra.mxu0 %v921
        %943 = vmatpush.msra.mxu0 %v920
        %944 = vmatpush.msra.mxu0 %v919
        %945 = vmatmul.f32.gmra.mxu0 %v924
        %v946 = vpop.f32.mrf.mxu0
        %v947 = vadd.f32 0.0, %v946
        %948 = vdwg.mxu0
        %v949 = vadd.f32 %v917, %v947
        %s950 = scalar_lea.vmem %s2, 448
        %v951 = vld [vmem:[%s950] sm:$0xff]
        %v952 = vld [vmem:[%s950 + $0x8] sm:$0xff]
        %v953 = vld [vmem:[%s950 + $0x10] sm:$0xff]
        %v954 = vld [vmem:[%s950 + $0x18] sm:$0x1]
        %v955 = vrot.slane %v499, 6
        %v956 = vsel %vm505, %v955, 0
        %v959 = vsel %vm509, %v954, 0
        %961 = vmatpush.msra.mxu0 0.0
        %962 = vmatpush.msra.mxu0 0.0
        %963 = vmatpush.msra.mxu0 0.0
        %964 = vmatpush.msra.mxu0 0.0
        %965 = vmatpush.msra.mxu0 0.0
        %966 = vmatpush.msra.mxu0 0.0
        %967 = vmatpush.msra.mxu0 0.0
        %968 = vmatpush.msra.mxu0 0.0
        %969 = vmatpush.msra.mxu0 0.0
        %970 = vmatpush.msra.mxu0 0.0
        %971 = vmatpush.msra.mxu0 0.0
        %972 = vmatpush.msra.mxu0 0.0
        %973 = vmatpush.msra.mxu0 %v959
        %974 = vmatpush.msra.mxu0 %v953
        %975 = vmatpush.msra.mxu0 %v952
        %976 = vmatpush.msra.mxu0 %v951
        %977 = vmatmul.f32.gmra.mxu0 %v956
        %v978 = vpop.f32.mrf.mxu0
        %v979 = vadd.f32 0.0, %v978
        %980 = vdwg.mxu0
        %v981 = vadd.f32 %v949, %v979
        %s982 = scalar_lea.vmem %s2, 480
        %v983 = vld [vmem:[%s982] sm:$0xff]
        %v984 = vld [vmem:[%s982 + $0x8] sm:$0xff]
        %v985 = vld [vmem:[%s982 + $0x10] sm:$0xff]
        %v986 = vld [vmem:[%s982 + $0x18] sm:$0x1]
        %v987 = vrot.slane %v499, 7
        %v988 = vsel %vm505, %v987, 0
        %v991 = vsel %vm509, %v986, 0
        %993 = vmatpush.msra.mxu0 0.0
        %994 = vmatpush.msra.mxu0 0.0
        %995 = vmatpush.msra.mxu0 0.0
        %996 = vmatpush.msra.mxu0 0.0
        %997 = vmatpush.msra.mxu0 0.0
        %998 = vmatpush.msra.mxu0 0.0
        %999 = vmatpush.msra.mxu0 0.0
        %1000 = vmatpush.msra.mxu0 0.0
        %1001 = vmatpush.msra.mxu0 0.0
        %1002 = vmatpush.msra.mxu0 0.0
        %1003 = vmatpush.msra.mxu0 0.0
        %1004 = vmatpush.msra.mxu0 0.0
        %1005 = vmatpush.msra.mxu0 %v991
        %1006 = vmatpush.msra.mxu0 %v985
        %1007 = vmatpush.msra.mxu0 %v984
        %1008 = vmatpush.msra.mxu0 %v983
        %1009 = vmatmul.f32.gmra.mxu0 %v988
        %v1010 = vpop.f32.mrf.mxu0
        %v1011 = vadd.f32 0.0, %v1010
        %1012 = vdwg.mxu0
        %v1013 = vadd.f32 %v981, %v1011
        %v1014 = vmax.f32 %v1013, 0.0
        %v1015 = vld [vmem:[%s3 + $0x8] sm:$0xff]
        %v1016 = vld [vmem:[%s3 + $0x10] sm:$0xff]
        %v1017 = vld [vmem:[%s3 + $0x18] sm:$0xff]
        %v1018 = vld [vmem:[%s3 + $0x20] sm:$0xff]
        %v1019 = vld [vmem:[%s3 + $0x28] sm:$0xff]
        %v1020 = vld [vmem:[%s3 + $0x30] sm:$0xff]
        %v1021 = vld [vmem:[%s3 + $0x38] sm:$0xff]
        %v1022 = vld [vmem:[%s3 + $0x40] sm:$0xff]
        %v1023 = vld [vmem:[%s3 + $0x48] sm:$0xff]
        %v1024 = vld [vmem:[%s3 + $0x50] sm:$0xff]
        %v1025 = vld [vmem:[%s3 + $0x58] sm:$0xff]
        %v1026 = vld [vmem:[%s3 + $0x60] sm:$0xff]
        %v1027 = vld [vmem:[%s3 + $0x68] sm:$0xff]
        %v1028 = vld [vmem:[%s3 + $0x70] sm:$0xff]
        %v1029 = vld [vmem:[%s3 + $0x78] sm:$0xff]
        %v1030 = vld [vmem:[%s3 + $0x80] sm:$0x1]
        %vm1031 = vcmask 982016
        %v1033 = vsel %vm1031, %v1014, 0
        %1035 = vmatpush.msra.mxu0 0.0
        %1036 = vmatpush.msra.mxu0 %v1029
        %1037 = vmatpush.msra.mxu0 %v1028
        %1038 = vmatpush.msra.mxu0 %v1027
        %1039 = vmatpush.msra.mxu0 %v1026
        %1040 = vmatpush.msra.mxu0 %v1025
        %1041 = vmatpush.msra.mxu0 %v1024
        %1042 = vmatpush.msra.mxu0 %v1023
        %1043 = vmatpush.msra.mxu0 %v1022
        %1044 = vmatpush.msra.mxu0 %v1021
        %1045 = vmatpush.msra.mxu0 %v1020
        %1046 = vmatpush.msra.mxu0 %v1019
        %1047 = vmatpush.msra.mxu0 %v1018
        %1048 = vmatpush.msra.mxu0 %v1017
        %1049 = vmatpush.msra.mxu0 %v1016
        %1050 = vmatpush.msra.mxu0 %v1015
        %1051 = vmatmul.f32.gmra.mxu0 %v1033
        %v1052 = vpop.f32.mrf.mxu0
        %v1053 = vadd.f32 %v1030, %v1052
        %1054 = vdwg.mxu0
        %v1055 = vmax.f32 %v1053, 0.0
        %v1056 = vld [vmem:[%s3 + $0x88] sm:$0xff]
        %v1057 = vld [vmem:[%s3 + $0x90] sm:$0xff]
        %v1058 = vld [vmem:[%s3 + $0x98] sm:$0xff]
        %v1059 = vld [vmem:[%s3 + $0xa0] sm:$0xff]
        %v1060 = vld [vmem:[%s3 + $0xa8] sm:$0xff]
        %v1061 = vld [vmem:[%s3 + $0xb0] sm:$0xff]
        %v1062 = vld [vmem:[%s3 + $0xb8] sm:$0xff]
        %v1063 = vld [vmem:[%s3 + $0xc0] sm:$0xff]
        %v1064 = vld [vmem:[%s3 + $0xc8] sm:$0xff]
        %v1065 = vld [vmem:[%s3 + $0xd0] sm:$0xff]
        %v1066 = vld [vmem:[%s3 + $0xd8] sm:$0xf]
        %v1067 = vld [vmem:[%s3 + $0xe0] sm:$0x1]
        %vm1068 = vcmask 687104
        %v1070 = vsel %vm1068, %v1055, 0
        %vm1072 = vcmask 1043456
        %v1074 = vsel %vm1072, %v1066, 0
        %1076 = vmatpush.msra.mxu0 0.0
        %1077 = vmatpush.msra.mxu0 0.0
        %1078 = vmatpush.msra.mxu0 0.0
        %1079 = vmatpush.msra.mxu0 0.0
        %1080 = vmatpush.msra.mxu0 0.0
        %1081 = vmatpush.msra.mxu0 %v1074
        %1082 = vmatpush.msra.mxu0 %v1065
        %1083 = vmatpush.msra.mxu0 %v1064
        %1084 = vmatpush.msra.mxu0 %v1063
        %1085 = vmatpush.msra.mxu0 %v1062
        %1086 = vmatpush.msra.mxu0 %v1061
        %1087 = vmatpush.msra.mxu0 %v1060
        %1088 = vmatpush.msra.mxu0 %v1059
        %1089 = vmatpush.msra.mxu0 %v1058
        %1090 = vmatpush.msra.mxu0 %v1057
        %1091 = vmatpush.msra.mxu0 %v1056
        %1092 = vmatmul.f32.gmra.mxu0 %v1070
        %v1093 = vpop.f32.mrf.mxu0
        %v1094 = vadd.f32 %v1067, %v1093
        %1095 = vdwg.mxu0
        %vm1096 = vcmask 24576
        %v1097 = vsel %vm1096, %v1094, -inf
        %1098 = vmax.xlane.f32.xlu0 %v1097
        %v1099 = vpop.xlane.xlu0 %1098
        %v1100 = vsub.f32 %v1094, %v1099
        %v1101 = vmul.f32 %v1100, 1.442695
        %v1102 = vpow.pop %v1101
        %v1103 = vsel %vm1096, %v1102, 0.0
        %1104 = vadd.xlane.f32.xlu0 %v1103
        %v1105 = vpop.xlane.xlu0 %1104
        %v1106 = vrcp.pop %v1105
        %v1107 = vmul.f32 %v1102, %v1106
        %1108 = vst.msk [vmem:[%s189] sm:$0x1] %vm1096, %v1107
        %s1109 = sand.u32 %s115, 1
        %s1110 = scalar_lea.sflag [#allocation3], %s1109
        %s1111 = sand.u32 %s115, 1
        %s1112 = scalar_lea.vmem [#allocation2], %s1111
        // Predicated region
        $region37: #{forward.3} parent=35 // pred_check
          %p1113 = pneg %p125
        $region38: #{forward.3} parent=35 // pred_check_branch
          %1115 = sbr.rel (%p1113) target = $region40
        $region39: #{forward.3} parent=35 // pred_region
          %1117 = vsyncadd %s1110, 0
          %s1118 = scalar_lea.hbm %s4, %s18
          %s1120 = sshll.u32 %s1112, 4
          %s1121 = int_to_ptr.vmem [resolvable:$true] %s1120
          %s1122 = sshll.u32 %s1118, 4
          %s1123 = int_to_ptr.hbm [resolvable:$true] %s1122
          %1125 = dma.vmem_to_hbm [thread:$0]  %s1121, 16, %s1123, %s1110
        $region40: #{forward.3} parent=35 // pred_fallthru
          _
      $region36: #{forward.3} parent=5 // pred_fallthru
        _
      %p1126 = scmp.le.s32.totalorder 2, %s13
      // Predicated region
      $region41: #{forward.3} parent=5 // pred_check
        %p1127 = pneg %p1126
      $region42: #{forward.3} parent=5 // pred_check_branch
        %1129 = sbr.rel (%p1127) target = $region44
      $region43: #{forward.3} parent=5 // pred_region
        %s1130 = ssub.s32 %s13, 2
        // Predicated region
        $region45: #{forward.3} parent=43 // pred_check
          %p1131 = pneg %p131
        $region46: #{forward.3} parent=43 // pred_check_branch
          %1133 = sbr.rel (%p1131) target = $region48
        $region47: #{forward.3} parent=43 // pred_region
          %s1134 = sand.u32 %s116, 1
          %s1135 = scalar_lea.sflag [#allocation3], %s1134
          %s1136 = sand.u32 %s116, 1
          %s1137 = scalar_lea.vmem [#allocation2], %s1136
          %1139 = dma.done %s1135, 16
        $region48: #{forward.3} parent=43 // pred_fallthru
          _
      $region44: #{forward.3} parent=5 // pred_fallthru
        _
    $region6: #{forward.3} parent=1 // loop_footer
      %s17 = sadd.s32 1, %s13
    $region7: #{forward.3} parent=1 // loop_footer_branch
      %12 = sbr.rel target = $region3
    $region8: #{forward.3} parent=1 // loop_exit
      _
    %1140 = vsyncpa [#allocation3], 1
    %s1141 = scalar_lea.sflag [#allocation3], 1
    %1142 = vsyncpa %s1141, 1

</llo_original>
